<compile_context>
chip_gen: v5e
topology: v5e:2x2
jax: 0.10.0
libtpu: 0.0.40
codegen_flags: <defaults>
</compile_context>

<pallas_src>
import jax
import jax.numpy as jnp
from jax.experimental import pallas as pl
from jax.experimental.pallas import tpu as pltpu


def _round_up(x, m):
    return (x + m - 1) // m * m


def _vmem_budget_bytes():
    """Per-core VMEM capacity with ~25% headroom for compiler scratch."""
    cap = None
    try:
        cap = getattr(pltpu.get_tpu_info(), "vmem_capacity_bytes", None)
    except Exception:
        cap = None
    if not cap:
        cap = 64 * 1024 * 1024          # conservative fallback (v7x-sized)
    return int(cap) * 3 // 4


def _ae_kernel(x_ref,
               w1_ref, b1_ref,
               w2_ref, b2_ref,
               w3_ref, b3_ref,
               w4_ref, b4_ref,
               o_ref):
    """Fused MLP-autoencoder forward for one batch tile.

    dots run on the MXU with bf16 operands / f32 accumulation; bias-add,
    ReLU stay in f32 on the VPU; the sigmoid is expressed via tanh (EUP).
    """
    # In-kernel cast of the f32 input tile to bf16 (saves a wrapper HBM pass).
    x = x_ref[...].astype(jnp.bfloat16)                       # (TB, D_p)

    # --- encoder ---
    h1 = jnp.dot(x, w1_ref[...], preferred_element_type=jnp.float32)
    h1 = jnp.maximum(h1 + b1_ref[...], 0.0)
    z = jnp.dot(h1.astype(jnp.bfloat16), w2_ref[...],
                preferred_element_type=jnp.float32)
    z = jnp.maximum(z + b2_ref[...], 0.0)

    # --- decoder ---
    h2 = jnp.dot(z.astype(jnp.bfloat16), w3_ref[...],
                 preferred_element_type=jnp.float32)
    h2 = jnp.maximum(h2 + b3_ref[...], 0.0)
    y = jnp.dot(h2.astype(jnp.bfloat16), w4_ref[...],
                preferred_element_type=jnp.float32)
    y = y + b4_ref[...]
    # sigmoid(y) == 0.5*tanh(0.5*y) + 0.5  (transcendental on the EUP slot)
    o_ref[...] = (0.5 * jnp.tanh(0.5 * y) + 0.5).astype(o_ref.dtype)


def prepare_params(params):
    """One-time parameter prep (hoisted out of the forward pass):
    zero-pad D / hidden / latent dims to multiples of 128 lanes and cast the
    weights to bf16. Padding is numerically exact (ReLU(0)=0, padded weight
    rows/cols are zero); padded output columns are sliced off after the kernel.
    """
    (w1, b1), (w2, b2), (w3, b3), (w4, b4) = params
    D, hid = w1.shape
    lat = w2.shape[1]
    D_p, hid_p, lat_p = (_round_up(v, 128) for v in (D, hid, lat))

    def pad2(a, r, c):
        return jnp.pad(a, ((0, r - a.shape[0]), (0, c - a.shape[1])))

    w1 = pad2(w1, D_p, hid_p);   b1 = pad2(b1, 1, hid_p)
    w2 = pad2(w2, hid_p, lat_p); b2 = pad2(b2, 1, lat_p)
    w3 = pad2(w3, lat_p, hid_p); b3 = pad2(b3, 1, hid_p)
    w4 = pad2(w4, hid_p, D_p);   b4 = pad2(b4, 1, D_p)

    weights = tuple(w.astype(jnp.bfloat16) for w in (w1, w2, w3, w4))
    biases = (b1, b2, b3, b4)                       # f32 (VPU epilogue math)
    return {"D": D, "D_p": D_p, "hid_p": hid_p, "lat_p": lat_p,
            "weights": weights, "biases": biases}


def autoencoder_forward(x_nchw, prepped, *, batch_tile=1024,
                        out_dtype=jnp.float32):
    """x_nchw: (B, C, H, W) float32. Returns reconstruction (B, C, H, W)."""
    B, C, H, W = x_nchw.shape
    D = C * H * W
    assert D == prepped["D"], "input feature size does not match the params"
    D_p, hid_p, lat_p = prepped["D_p"], prepped["hid_p"], prepped["lat_p"]
    w1b, w2b, w3b, w4b = prepped["weights"]
    b1, b2, b3, b4 = prepped["biases"]

    out_itemsize = jnp.dtype(out_dtype).itemsize

    # --- VMEM-driven tile sizing -------------------------------------------
    budget = _vmem_budget_bytes()
    weight_bytes = 2 * (w1b.size + w2b.size + w3b.size + w4b.size)   # bf16
    bias_bytes = 4 * (b1.size + b2.size + b3.size + b4.size)         # f32
    # per-row VMEM: double-buffered f32 x tile + double-buffered out tile
    # + f32/bf16 activation headroom.
    per_row = (2 * D_p * 4 + 2 * D_p * out_itemsize
               + 6 * (D_p + 2 * hid_p + lat_p))
    tb_cap = max(16, (budget - weight_bytes - bias_bytes) // per_row // 16 * 16)

    B16 = _round_up(B, 16)
    # Aim for >= 2 grid steps (multiple of 16 rows) so v7x megacore can shard
    # the batch axis across its two TensorCores.
    half = _round_up(pl.cdiv(B16, 2), 16)
    TB = max(16, min(_round_up(batch_tile, 16), tb_cap, half))
    B_p = _round_up(B16, TB)
    grid = (B_p // TB,)

    # --- input layout -------------------------------------------------------
    x2d = x_nchw.reshape(B, D)
    if (B_p - B) or (D_p - D):
        x2d = jnp.pad(x2d, ((0, B_p - B), (0, D_p - D)))

    # --- scheduling hints ---------------------------------------------------
    flops = 2 * B_p * (D_p * hid_p + hid_p * lat_p + lat_p * hid_p + hid_p * D_p)
    bytes_accessed = (B_p * D_p * 4 + B_p * D_p * out_itemsize
                      + weight_bytes + bias_bytes)
    cost = pl.CostEstimate(flops=flops,
                           transcendentals=B_p * D_p,       # tanh
                           bytes_accessed=bytes_accessed)

    # Keep the limit within the per-generation budget (never the full physical
    # VMEM); 2x on weights covers the double-buffered fallback path.
    needed = int(1.5 * (2 * weight_bytes + bias_bytes + TB * per_row))
    vmem_limit = int(min(max(needed, 16 * 1024 * 1024), budget))

    row_spec = pl.BlockSpec((TB, D_p), lambda i: (i, 0))

    def _run(single_buffer_weights):
        if single_buffer_weights:
            def stat(shape):
                return pl.BlockSpec(shape, lambda i: (0, 0),
                                    pipeline_mode=pl.Buffered(1))
        else:
            def stat(shape):
                return pl.BlockSpec(shape, lambda i: (0, 0))

        return pl.pallas_call(
            _ae_kernel,
            out_shape=jax.ShapeDtypeStruct((B_p, D_p), out_dtype),
            grid=grid,
            in_specs=[
                row_spec,
                stat((D_p, hid_p)),   stat((1, hid_p)),
                stat((hid_p, lat_p)), stat((1, lat_p)),
                stat((lat_p, hid_p)), stat((1, hid_p)),
                stat((hid_p, D_p)),   stat((1, D_p)),
            ],
            out_specs=pl.BlockSpec((TB, D_p), lambda i: (i, 0)),
            compiler_params=pltpu.CompilerParams(
                dimension_semantics=("parallel",),
                vmem_limit_bytes=vmem_limit),
            cost_estimate=cost,
        )(x2d, w1b, b1, w2b, b2, w3b, b3, w4b, b4)

    try:
        out2d = _run(single_buffer_weights=True)
    except Exception:
        # pl.Buffered(1) not supported on this jax/libtpu combo -> default
        # double-buffered stationary specs (correctness identical).
        out2d = _run(single_buffer_weights=False)

    return out2d[:B, :D].reshape(B, C, H, W).astype(jnp.float32)


def init_params(key, in_dim, hidden, latent):
    """Deterministic PyTorch-style (Kaiming-uniform-ish) init, f32 master copy."""
    def linear(k, fan_in, fan_out):
        kw, kb = jax.random.split(k)
        bound = 1.0 / jnp.sqrt(fan_in)
        w = jax.random.uniform(kw, (fan_in, fan_out), jnp.float32, -bound, bound)
        b = jax.random.uniform(kb, (1, fan_out), jnp.float32, -bound, bound)
        return w, b

    k1, k2, k3, k4 = jax.random.split(key, 4)
    return (
        linear(k1, in_dim, hidden),   # encoder layer 1
        linear(k2, hidden, latent),   # encoder layer 2
        linear(k3, latent, hidden),   # decoder layer 1
        linear(k4, hidden, in_dim),   # decoder layer 2
    )


def _reference_forward(x_nchw, params):
    """Pure-JAX reference mirroring the kernel's bf16-operand / f32-accum math."""
    B, C, H, W = x_nchw.shape
    bf, f32 = jnp.bfloat16, jnp.float32
    x = x_nchw.reshape(B, -1).astype(bf)
    (w1, b1), (w2, b2), (w3, b3), (w4, b4) = params
    dot = lambda a, b: jnp.dot(a.astype(bf), b.astype(bf),
                               preferred_element_type=f32)
    h = jnp.maximum(dot(x, w1) + b1, 0.0)
    z = jnp.maximum(dot(h, w2) + b2, 0.0)
    h2 = jnp.maximum(dot(z, w3) + b3, 0.0)
    y = jax.nn.sigmoid(dot(h2, w4) + b4)
    return y.reshape(B, C, H, W).astype(f32)


if __name__ == "__main__":
    key = jax.random.PRNGKey(0)
    k_x, k_p = jax.random.split(key)

    B, C, H, W = 2, 4, 16, 16           # small NCHW image batch
    D = C * H * W                       # 1024
    HIDDEN, LATENT = 128, 32

    x = jax.random.normal(k_x, (B, C, H, W), dtype=jnp.float32)
    params = init_params(k_p, D, HIDDEN, LATENT)

    prepped = prepare_params(params)    # one-time prep (padding + bf16 cast)

    out = autoencoder_forward(x, prepped)
    out = jax.block_until_ready(out)

    ref = _reference_forward(x, params)
    assert out.shape == (B, C, H, W)
    assert jnp.max(jnp.abs(out - ref)) < 5e-3, "mismatch vs reference"

    print("KERNEL_OK")
</pallas_src>

<mosaic_0001>
module attributes {stable_mosaic.version = 11 : i64} {
  func.func @_ae_kernel(%arg0: i32, %arg1: memref<16x1024xf32, #tpu.memory_space<vmem>>, %arg2: memref<1024x128xbf16, #tpu.memory_space<vmem>>, %arg3: memref<1x128xf32, #tpu.memory_space<vmem>>, %arg4: memref<128x128xbf16, #tpu.memory_space<vmem>>, %arg5: memref<1x128xf32, #tpu.memory_space<vmem>>, %arg6: memref<128x128xbf16, #tpu.memory_space<vmem>>, %arg7: memref<1x128xf32, #tpu.memory_space<vmem>>, %arg8: memref<128x1024xbf16, #tpu.memory_space<vmem>>, %arg9: memref<1x1024xf32, #tpu.memory_space<vmem>>, %arg10: memref<16x1024xf32, #tpu.memory_space<vmem>>) attributes {dimension_semantics = [#tpu.dimension_semantics<parallel>], iteration_bounds = array<i64: 1>, scalar_prefetch = 0 : i64, scratch_operands = 0 : i64, tpu.core_type = #tpu.core_type<tc>, window_params = [{transform_indices = @transform_0, window_bounds = array<i64: 16, 1024>}, {pipeline_mode = #tpu.pipeline_mode<synchronous>, transform_indices = @transform_1, window_bounds = array<i64: 1024, 128>}, {pipeline_mode = #tpu.pipeline_mode<synchronous>, transform_indices = @transform_2, window_bounds = array<i64: 1, 128>}, {pipeline_mode = #tpu.pipeline_mode<synchronous>, transform_indices = @transform_3, window_bounds = array<i64: 128, 128>}, {pipeline_mode = #tpu.pipeline_mode<synchronous>, transform_indices = @transform_4, window_bounds = array<i64: 1, 128>}, {pipeline_mode = #tpu.pipeline_mode<synchronous>, transform_indices = @transform_5, window_bounds = array<i64: 128, 128>}, {pipeline_mode = #tpu.pipeline_mode<synchronous>, transform_indices = @transform_6, window_bounds = array<i64: 1, 128>}, {pipeline_mode = #tpu.pipeline_mode<synchronous>, transform_indices = @transform_7, window_bounds = array<i64: 128, 1024>}, {pipeline_mode = #tpu.pipeline_mode<synchronous>, transform_indices = @transform_8, window_bounds = array<i64: 1, 1024>}, {transform_indices = @transform_9, window_bounds = array<i64: 16, 1024>}]} {
    %c0 = arith.constant 0 : index
    %c0_0 = arith.constant 0 : index
    %0 = vector.load %arg1[%c0, %c0_0] : memref<16x1024xf32, #tpu.memory_space<vmem>>, vector<16x1024xf32>
    %1 = arith.truncf %0 : vector<16x1024xf32> to vector<16x1024xbf16>
    %c0_1 = arith.constant 0 : index
    %c0_2 = arith.constant 0 : index
    %2 = vector.load %arg2[%c0_1, %c0_2] : memref<1024x128xbf16, #tpu.memory_space<vmem>>, vector<1024x128xbf16>
    %cst = arith.constant dense<0.000000e+00> : vector<16x128xf32>
    %3 = tpu.matmul %1, %2, %cst {dimension_numbers = #tpu.dot_dimension_numbers<[1], [0], [0], [1], [0, 0, 1, 1], [], []>} : vector<16x1024xbf16>, vector<1024x128xbf16>, vector<16x128xf32> -> vector<16x128xf32>
    %c0_3 = arith.constant 0 : index
    %c0_4 = arith.constant 0 : index
    %4 = vector.load %arg3[%c0_3, %c0_4] : memref<1x128xf32, #tpu.memory_space<vmem>>, vector<1x128xf32>
    %5 = vector.broadcast %4 : vector<1x128xf32> to vector<16x128xf32>
    %6 = arith.addf %3, %5 : vector<16x128xf32>
    %cst_5 = arith.constant 0.000000e+00 : f32
    %7 = vector.broadcast %cst_5 : f32 to vector<16x128xf32>
    %8 = arith.maximumf %6, %7 : vector<16x128xf32>
    %9 = arith.truncf %8 : vector<16x128xf32> to vector<16x128xbf16>
    %c0_6 = arith.constant 0 : index
    %c0_7 = arith.constant 0 : index
    %10 = vector.load %arg4[%c0_6, %c0_7] : memref<128x128xbf16, #tpu.memory_space<vmem>>, vector<128x128xbf16>
    %cst_8 = arith.constant dense<0.000000e+00> : vector<16x128xf32>
    %11 = tpu.matmul %9, %10, %cst_8 {dimension_numbers = #tpu.dot_dimension_numbers<[1], [0], [0], [1], [0, 0, 1, 1], [], []>} : vector<16x128xbf16>, vector<128x128xbf16>, vector<16x128xf32> -> vector<16x128xf32>
    %c0_9 = arith.constant 0 : index
    %c0_10 = arith.constant 0 : index
    %12 = vector.load %arg5[%c0_9, %c0_10] : memref<1x128xf32, #tpu.memory_space<vmem>>, vector<1x128xf32>
    %13 = vector.broadcast %12 : vector<1x128xf32> to vector<16x128xf32>
    %14 = arith.addf %11, %13 : vector<16x128xf32>
    %cst_11 = arith.constant 0.000000e+00 : f32
    %15 = vector.broadcast %cst_11 : f32 to vector<16x128xf32>
    %16 = arith.maximumf %14, %15 : vector<16x128xf32>
    %17 = arith.truncf %16 : vector<16x128xf32> to vector<16x128xbf16>
    %c0_12 = arith.constant 0 : index
    %c0_13 = arith.constant 0 : index
    %18 = vector.load %arg6[%c0_12, %c0_13] : memref<128x128xbf16, #tpu.memory_space<vmem>>, vector<128x128xbf16>
    %cst_14 = arith.constant dense<0.000000e+00> : vector<16x128xf32>
    %19 = tpu.matmul %17, %18, %cst_14 {dimension_numbers = #tpu.dot_dimension_numbers<[1], [0], [0], [1], [0, 0, 1, 1], [], []>} : vector<16x128xbf16>, vector<128x128xbf16>, vector<16x128xf32> -> vector<16x128xf32>
    %c0_15 = arith.constant 0 : index
    %c0_16 = arith.constant 0 : index
    %20 = vector.load %arg7[%c0_15, %c0_16] : memref<1x128xf32, #tpu.memory_space<vmem>>, vector<1x128xf32>
    %21 = vector.broadcast %20 : vector<1x128xf32> to vector<16x128xf32>
    %22 = arith.addf %19, %21 : vector<16x128xf32>
    %cst_17 = arith.constant 0.000000e+00 : f32
    %23 = vector.broadcast %cst_17 : f32 to vector<16x128xf32>
    %24 = arith.maximumf %22, %23 : vector<16x128xf32>
    %25 = arith.truncf %24 : vector<16x128xf32> to vector<16x128xbf16>
    %c0_18 = arith.constant 0 : index
    %c0_19 = arith.constant 0 : index
    %26 = vector.load %arg8[%c0_18, %c0_19] : memref<128x1024xbf16, #tpu.memory_space<vmem>>, vector<128x1024xbf16>
    %cst_20 = arith.constant dense<0.000000e+00> : vector<16x1024xf32>
    %27 = tpu.matmul %25, %26, %cst_20 {dimension_numbers = #tpu.dot_dimension_numbers<[1], [0], [0], [1], [0, 0, 1, 1], [], []>} : vector<16x128xbf16>, vector<128x1024xbf16>, vector<16x1024xf32> -> vector<16x1024xf32>
    %c0_21 = arith.constant 0 : index
    %c0_22 = arith.constant 0 : index
    %28 = vector.load %arg9[%c0_21, %c0_22] : memref<1x1024xf32, #tpu.memory_space<vmem>>, vector<1x1024xf32>
    %29 = vector.broadcast %28 : vector<1x1024xf32> to vector<16x1024xf32>
    %30 = arith.addf %27, %29 : vector<16x1024xf32>
    %cst_23 = arith.constant 5.000000e-01 : f32
    %31 = vector.broadcast %cst_23 : f32 to vector<16x1024xf32>
    %32 = arith.mulf %31, %30 : vector<16x1024xf32>
    %33 = math.tanh %32 : vector<16x1024xf32>
    %cst_24 = arith.constant 5.000000e-01 : f32
    %34 = vector.broadcast %cst_24 : f32 to vector<16x1024xf32>
    %35 = arith.mulf %34, %33 : vector<16x1024xf32>
    %cst_25 = arith.constant 5.000000e-01 : f32
    %36 = vector.broadcast %cst_25 : f32 to vector<16x1024xf32>
    %37 = arith.addf %35, %36 : vector<16x1024xf32>
    %c0_26 = arith.constant 0 : index
    %c0_27 = arith.constant 0 : index
    %38 = vector.load %arg10[%c0_26, %c0_27] : memref<16x1024xf32, #tpu.memory_space<vmem>>, vector<16x1024xf32>
    tpu.vector_store %arg10[%c0_26, %c0_27], %37 {strides = array<i32>} : memref<16x1024xf32, #tpu.memory_space<vmem>>, vector<16x1024xf32>,
    return
  }
  func.func @transform_0(%arg0: i32) -> (i32, i32) {
    %c0_i32 = arith.constant 0 : i32
    %c0_i32_0 = arith.constant 0 : i32
    return %arg0, %c0_i32 : i32, i32
  }
  func.func @transform_1(%arg0: i32) -> (i32, i32) {
    %c0_i32 = arith.constant 0 : i32
    %c0_i32_0 = arith.constant 0 : i32
    %c0_i32_1 = arith.constant 0 : i32
    return %c0_i32, %c0_i32_0 : i32, i32
  }
  func.func @transform_2(%arg0: i32) -> (i32, i32) {
    %c0_i32 = arith.constant 0 : i32
    %c0_i32_0 = arith.constant 0 : i32
    %c0_i32_1 = arith.constant 0 : i32
    return %c0_i32, %c0_i32_0 : i32, i32
  }
  func.func @transform_3(%arg0: i32) -> (i32, i32) {
    %c0_i32 = arith.constant 0 : i32
    %c0_i32_0 = arith.constant 0 : i32
    %c0_i32_1 = arith.constant 0 : i32
    return %c0_i32, %c0_i32_0 : i32, i32
  }
  func.func @transform_4(%arg0: i32) -> (i32, i32) {
    %c0_i32 = arith.constant 0 : i32
    %c0_i32_0 = arith.constant 0 : i32
    %c0_i32_1 = arith.constant 0 : i32
    return %c0_i32, %c0_i32_0 : i32, i32
  }
  func.func @transform_5(%arg0: i32) -> (i32, i32) {
    %c0_i32 = arith.constant 0 : i32
    %c0_i32_0 = arith.constant 0 : i32
    %c0_i32_1 = arith.constant 0 : i32
    return %c0_i32, %c0_i32_0 : i32, i32
  }
  func.func @transform_6(%arg0: i32) -> (i32, i32) {
    %c0_i32 = arith.constant 0 : i32
    %c0_i32_0 = arith.constant 0 : i32
    %c0_i32_1 = arith.constant 0 : i32
    return %c0_i32, %c0_i32_0 : i32, i32
  }
  func.func @transform_7(%arg0: i32) -> (i32, i32) {
    %c0_i32 = arith.constant 0 : i32
    %c0_i32_0 = arith.constant 0 : i32
    %c0_i32_1 = arith.constant 0 : i32
    return %c0_i32, %c0_i32_0 : i32, i32
  }
  func.func @transform_8(%arg0: i32) -> (i32, i32) {
    %c0_i32 = arith.constant 0 : i32
    %c0_i32_0 = arith.constant 0 : i32
    %c0_i32_1 = arith.constant 0 : i32
    return %c0_i32, %c0_i32_0 : i32, i32
  }
  func.func @transform_9(%arg0: i32) -> (i32, i32) {
    %c0_i32 = arith.constant 0 : i32
    %c0_i32_0 = arith.constant 0 : i32
    return %arg0, %c0_i32 : i32, i32
  }
}

module attributes {stable_mosaic.version = 11 : i64} {
  func.func @_ae_kernel(%arg0: i32, %arg1: memref<16x1024xf32, #tpu.memory_space<vmem>>, %arg2: memref<1024x128xbf16, #tpu.memory_space<vmem>>, %arg3: memref<1x128xf32, #tpu.memory_space<vmem>>, %arg4: memref<128x128xbf16, #tpu.memory_space<vmem>>, %arg5: memref<1x128xf32, #tpu.memory_space<vmem>>, %arg6: memref<128x128xbf16, #tpu.memory_space<vmem>>, %arg7: memref<1x128xf32, #tpu.memory_space<vmem>>, %arg8: memref<128x1024xbf16, #tpu.memory_space<vmem>>, %arg9: memref<1x1024xf32, #tpu.memory_space<vmem>>, %arg10: memref<16x1024xf32, #tpu.memory_space<vmem>>) attributes {dimension_semantics = [#tpu.dimension_semantics<parallel>], iteration_bounds = array<i64: 1>, scalar_prefetch = 0 : i64, scratch_operands = 0 : i64, tpu.core_type = #tpu.core_type<tc>, window_params = [{transform_indices = @transform_0, window_bounds = array<i64: 16, 1024>}, {pipeline_mode = #tpu.pipeline_mode<synchronous>, transform_indices = @transform_1, window_bounds = array<i64: 1024, 128>}, {pipeline_mode = #tpu.pipeline_mode<synchronous>, transform_indices = @transform_2, window_bounds = array<i64: 1, 128>}, {pipeline_mode = #tpu.pipeline_mode<synchronous>, transform_indices = @transform_3, window_bounds = array<i64: 128, 128>}, {pipeline_mode = #tpu.pipeline_mode<synchronous>, transform_indices = @transform_4, window_bounds = array<i64: 1, 128>}, {pipeline_mode = #tpu.pipeline_mode<synchronous>, transform_indices = @transform_5, window_bounds = array<i64: 128, 128>}, {pipeline_mode = #tpu.pipeline_mode<synchronous>, transform_indices = @transform_6, window_bounds = array<i64: 1, 128>}, {pipeline_mode = #tpu.pipeline_mode<synchronous>, transform_indices = @transform_7, window_bounds = array<i64: 128, 1024>}, {pipeline_mode = #tpu.pipeline_mode<synchronous>, transform_indices = @transform_8, window_bounds = array<i64: 1, 1024>}, {transform_indices = @transform_9, window_bounds = array<i64: 16, 1024>}]} {
    %c0 = arith.constant 0 : index
    %c0_0 = arith.constant 0 : index
    %0 = vector.load %arg1[%c0, %c0_0] : memref<16x1024xf32, #tpu.memory_space<vmem>>, vector<16x1024xf32>
    %1 = arith.truncf %0 : vector<16x1024xf32> to vector<16x1024xbf16>
    %c0_1 = arith.constant 0 : index
    %c0_2 = arith.constant 0 : index
    %2 = vector.load %arg2[%c0_1, %c0_2] : memref<1024x128xbf16, #tpu.memory_space<vmem>>, vector<1024x128xbf16>
    %cst = arith.constant dense<0.000000e+00> : vector<16x128xf32>
    %3 = tpu.matmul %1, %2, %cst {dimension_numbers = #tpu.dot_dimension_numbers<[1], [0], [0], [1], [0, 0, 1, 1], [], []>} : vector<16x1024xbf16>, vector<1024x128xbf16>, vector<16x128xf32> -> vector<16x128xf32>
    %c0_3 = arith.constant 0 : index
    %c0_4 = arith.constant 0 : index
    %4 = vector.load %arg3[%c0_3, %c0_4] : memref<1x128xf32, #tpu.memory_space<vmem>>, vector<1x128xf32>
    %5 = vector.broadcast %4 : vector<1x128xf32> to vector<16x128xf32>
    %6 = arith.addf %3, %5 : vector<16x128xf32>
    %cst_5 = arith.constant 0.000000e+00 : f32
    %7 = vector.broadcast %cst_5 : f32 to vector<16x128xf32>
    %8 = arith.maximumf %6, %7 : vector<16x128xf32>
    %9 = arith.truncf %8 : vector<16x128xf32> to vector<16x128xbf16>
    %c0_6 = arith.constant 0 : index
    %c0_7 = arith.constant 0 : index
    %10 = vector.load %arg4[%c0_6, %c0_7] : memref<128x128xbf16, #tpu.memory_space<vmem>>, vector<128x128xbf16>
    %cst_8 = arith.constant dense<0.000000e+00> : vector<16x128xf32>
    %11 = tpu.matmul %9, %10, %cst_8 {dimension_numbers = #tpu.dot_dimension_numbers<[1], [0], [0], [1], [0, 0, 1, 1], [], []>} : vector<16x128xbf16>, vector<128x128xbf16>, vector<16x128xf32> -> vector<16x128xf32>
    %c0_9 = arith.constant 0 : index
    %c0_10 = arith.constant 0 : index
    %12 = vector.load %arg5[%c0_9, %c0_10] : memref<1x128xf32, #tpu.memory_space<vmem>>, vector<1x128xf32>
    %13 = vector.broadcast %12 : vector<1x128xf32> to vector<16x128xf32>
    %14 = arith.addf %11, %13 : vector<16x128xf32>
    %cst_11 = arith.constant 0.000000e+00 : f32
    %15 = vector.broadcast %cst_11 : f32 to vector<16x128xf32>
    %16 = arith.maximumf %14, %15 : vector<16x128xf32>
    %17 = arith.truncf %16 : vector<16x128xf32> to vector<16x128xbf16>
    %c0_12 = arith.constant 0 : index
    %c0_13 = arith.constant 0 : index
    %18 = vector.load %arg6[%c0_12, %c0_13] : memref<128x128xbf16, #tpu.memory_space<vmem>>, vector<128x128xbf16>
    %cst_14 = arith.constant dense<0.000000e+00> : vector<16x128xf32>
    %19 = tpu.matmul %17, %18, %cst_14 {dimension_numbers = #tpu.dot_dimension_numbers<[1], [0], [0], [1], [0, 0, 1, 1], [], []>} : vector<16x128xbf16>, vector<128x128xbf16>, vector<16x128xf32> -> vector<16x128xf32>
    %c0_15 = arith.constant 0 : index
    %c0_16 = arith.constant 0 : index
    %20 = vector.load %arg7[%c0_15, %c0_16] : memref<1x128xf32, #tpu.memory_space<vmem>>, vector<1x128xf32>
    %21 = vector.broadcast %20 : vector<1x128xf32> to vector<16x128xf32>
    %22 = arith.addf %19, %21 : vector<16x128xf32>
    %cst_17 = arith.constant 0.000000e+00 : f32
    %23 = vector.broadcast %cst_17 : f32 to vector<16x128xf32>
    %24 = arith.maximumf %22, %23 : vector<16x128xf32>
    %25 = arith.truncf %24 : vector<16x128xf32> to vector<16x128xbf16>
    %c0_18 = arith.constant 0 : index
    %c0_19 = arith.constant 0 : index
    %26 = vector.load %arg8[%c0_18, %c0_19] : memref<128x1024xbf16, #tpu.memory_space<vmem>>, vector<128x1024xbf16>
    %cst_20 = arith.constant dense<0.000000e+00> : vector<16x1024xf32>
    %27 = tpu.matmul %25, %26, %cst_20 {dimension_numbers = #tpu.dot_dimension_numbers<[1], [0], [0], [1], [0, 0, 1, 1], [], []>} : vector<16x128xbf16>, vector<128x1024xbf16>, vector<16x1024xf32> -> vector<16x1024xf32>
    %c0_21 = arith.constant 0 : index
    %c0_22 = arith.constant 0 : index
    %28 = vector.load %arg9[%c0_21, %c0_22] : memref<1x1024xf32, #tpu.memory_space<vmem>>, vector<1x1024xf32>
    %29 = vector.broadcast %28 : vector<1x1024xf32> to vector<16x1024xf32>
    %30 = arith.addf %27, %29 : vector<16x1024xf32>
    %cst_23 = arith.constant 5.000000e-01 : f32
    %31 = vector.broadcast %cst_23 : f32 to vector<16x1024xf32>
    %32 = arith.mulf %31, %30 : vector<16x1024xf32>
    %33 = math.tanh %32 : vector<16x1024xf32>
    %cst_24 = arith.constant 5.000000e-01 : f32
    %34 = vector.broadcast %cst_24 : f32 to vector<16x1024xf32>
    %35 = arith.mulf %34, %33 : vector<16x1024xf32>
    %cst_25 = arith.constant 5.000000e-01 : f32
    %36 = vector.broadcast %cst_25 : f32 to vector<16x1024xf32>
    %37 = arith.addf %35, %36 : vector<16x1024xf32>
    %c0_26 = arith.constant 0 : index
    %c0_27 = arith.constant 0 : index
    %38 = vector.load %arg10[%c0_26, %c0_27] : memref<16x1024xf32, #tpu.memory_space<vmem>>, vector<16x1024xf32>
    tpu.vector_store %arg10[%c0_26, %c0_27], %37 {strides = array<i32>} : memref<16x1024xf32, #tpu.memory_space<vmem>>, vector<16x1024xf32>,
    return
  }
  func.func @transform_0(%arg0: i32) -> (i32, i32) {
    %c0_i32 = arith.constant 0 : i32
    %c0_i32_0 = arith.constant 0 : i32
    return %arg0, %c0_i32 : i32, i32
  }
  func.func @transform_1(%arg0: i32) -> (i32, i32) {
    %c0_i32 = arith.constant 0 : i32
    %c0_i32_0 = arith.constant 0 : i32
    %c0_i32_1 = arith.constant 0 : i32
    return %c0_i32, %c0_i32_0 : i32, i32
  }
  func.func @transform_2(%arg0: i32) -> (i32, i32) {
    %c0_i32 = arith.constant 0 : i32
    %c0_i32_0 = arith.constant 0 : i32
    %c0_i32_1 = arith.constant 0 : i32
    return %c0_i32, %c0_i32_0 : i32, i32
  }
  func.func @transform_3(%arg0: i32) -> (i32, i32) {
    %c0_i32 = arith.constant 0 : i32
    %c0_i32_0 = arith.constant 0 : i32
    %c0_i32_1 = arith.constant 0 : i32
    return %c0_i32, %c0_i32_0 : i32, i32
  }
  func.func @transform_4(%arg0: i32) -> (i32, i32) {
    %c0_i32 = arith.constant 0 : i32
    %c0_i32_0 = arith.constant 0 : i32
    %c0_i32_1 = arith.constant 0 : i32
    return %c0_i32, %c0_i32_0 : i32, i32
  }
  func.func @transform_5(%arg0: i32) -> (i32, i32) {
    %c0_i32 = arith.constant 0 : i32
    %c0_i32_0 = arith.constant 0 : i32
    %c0_i32_1 = arith.constant 0 : i32
    return %c0_i32, %c0_i32_0 : i32, i32
  }
  func.func @transform_6(%arg0: i32) -> (i32, i32) {
    %c0_i32 = arith.constant 0 : i32
    %c0_i32_0 = arith.constant 0 : i32
    %c0_i32_1 = arith.constant 0 : i32
    return %c0_i32, %c0_i32_0 : i32, i32
  }
  func.func @transform_7(%arg0: i32) -> (i32, i32) {
    %c0_i32 = arith.constant 0 : i32
    %c0_i32_0 = arith.constant 0 : i32
    %c0_i32_1 = arith.constant 0 : i32
    return %c0_i32, %c0_i32_0 : i32, i32
  }
  func.func @transform_8(%arg0: i32) -> (i32, i32) {
    %c0_i32 = arith.constant 0 : i32
    %c0_i32_0 = arith.constant 0 : i32
    %c0_i32_1 = arith.constant 0 : i32
    return %c0_i32, %c0_i32_0 : i32, i32
  }
  func.func @transform_9(%arg0: i32) -> (i32, i32) {
    %c0_i32 = arith.constant 0 : i32
    %c0_i32_0 = arith.constant 0 : i32
    return %arg0, %c0_i32 : i32, i32
  }
}

</mosaic_0001>

<llo_original>
// kernel: tpu_custom_call.1
$region0: #{tpu_custom_call.1}
  #allocation0 [shape = 'u32[]', space=smem, size = 0x4, offset = 0x4, fixed_abs, tag = 'smem constant byte address 0x4 - core index']
  #allocation1 [shape = 'u32[72,128]{1,0:T(1,128)}', space=vmem, size = 0x9000, scoped, tag = 'internal scratch']
  %s0 = inlined_call_operand.hbm [shape: f32[16,1024], index: 0, kind: input, shape index: {}]
  %s1 = inlined_call_operand.hbm [shape: bf16[1024,128], index: 1, kind: input, shape index: {}]
  %s2 = inlined_call_operand.vmem [shape: f32[1,128], index: 2, kind: input, shape index: {}]
  %s3 = inlined_call_operand.hbm [shape: bf16[128,128], index: 3, kind: input, shape index: {}]
  %s4 = inlined_call_operand.vmem [shape: f32[1,128], index: 4, kind: input, shape index: {}]
  %s5 = inlined_call_operand.hbm [shape: bf16[128,128], index: 5, kind: input, shape index: {}]
  %s6 = inlined_call_operand.vmem [shape: f32[1,128], index: 6, kind: input, shape index: {}]
  %s7 = inlined_call_operand.hbm [shape: bf16[128,1024], index: 7, kind: input, shape index: {}]
  %s8 = inlined_call_operand.hbm [shape: f32[1,1024], index: 8, kind: input, shape index: {}]
  %s9 = inlined_call_operand.hbm [shape: f32[16,1024], index: 9, kind: output, shape index: {}]
  %s10 = sld [smem:[#allocation0]]
  $region70: #{tpu_custom_call.1} parent=0
    _
  %s12 = ssub.s32 1, %s10
  %s13 = scalar_select 0, %s12, %s10
  $region1: #{tpu_custom_call.1} parent=0
    #allocation2 [shape = 'u8[65536]{0}', space=vmem, size = 0x10000, scoped, tag = 'input window, operand 0, single buffered']
    #allocation3 [shape = 's32[1]{0}', space=sflag, size = 0x4, scoped, tag = 'scoped memory for tpu_custom_call.1']
    #allocation4 [shape = 's32[1]{0}', space=sflag, size = 0x4, scoped, tag = 'scoped memory for tpu_custom_call.1']
    #allocation5 [shape = 'u8[262144]{0}', space=vmem, size = 0x40000, scoped, tag = 'input window, operand 1, single buffered']
    #allocation6 [shape = 's32[1]{0}', space=sflag, size = 0x4, scoped, tag = 'scoped memory for tpu_custom_call.1']
    #allocation7 [shape = 'u8[32768]{0}', space=vmem, size = 0x8000, scoped, tag = 'input window, operand 3, single buffered']
    #allocation8 [shape = 'u8[32768]{0}', space=vmem, size = 0x8000, scoped, tag = 'input window, operand 5, single buffered']
    #allocation9 [shape = 's32[1]{0}', space=sflag, size = 0x4, scoped, tag = 'scoped memory for tpu_custom_call.1']
    #allocation10 [shape = 'u8[262144]{0}', space=vmem, size = 0x40000, scoped, tag = 'input window, operand 7, single buffered']
    #allocation11 [shape = 'u8[4096]{0}', space=vmem, size = 0x1000, scoped, tag = 'input window, operand 8, single buffered']
    #allocation12 [shape = 's32[1]{0}', space=sflag, size = 0x4, scoped, tag = 'scoped memory for tpu_custom_call.1']
    #allocation13 [shape = 'u8[65536]{0}', space=vmem, size = 0x10000, scoped, tag = 'output window, operand 0, single buffered']
    %14 = vsyncpa [#allocation3], 0
    %15 = vsyncpa [#allocation6], 0
    %16 = vsyncpa [#allocation9], 0
    %17 = vsyncpa [#allocation12], 0
    %18 = vsyncpa [#allocation4], 0
    // Predicated region
    $region2: #{tpu_custom_call.1} parent=1 // pred_check
      _
    $region3: #{tpu_custom_call.1} parent=1 // pred_check_branch
      %20 = sbr.rel (0) target = $region5
    $region4: #{tpu_custom_call.1} parent=1 // pred_region
      %22 = vsyncadd [#allocation3], 0
      %s23 = sshll.u32 %s0, 4
      %s24 = int_to_ptr.hbm [resolvable:$true] %s23
      %s25 = sshll.u32 [#allocation2], 4
      %s26 = int_to_ptr.vmem [resolvable:$true] %s25
      %31 = dma.hbm_to_vmem [thread:$0]  %s24, 2048, %s26, [#allocation3], 1024, 1024, 64
    $region5: #{tpu_custom_call.1} parent=1 // pred_fallthru
      _
    // Predicated region
    $region6: #{tpu_custom_call.1} parent=1 // pred_check
      _
    $region7: #{tpu_custom_call.1} parent=1 // pred_check_branch
      %33 = sbr.rel (0) target = $region9
    $region8: #{tpu_custom_call.1} parent=1 // pred_region
      %35 = vsyncadd [#allocation6], 0
      %s36 = sshll.u32 %s1, 4
      %s37 = int_to_ptr.hbm [resolvable:$true] %s36
      %s38 = sshll.u32 [#allocation5], 4
      %s39 = int_to_ptr.vmem [resolvable:$true] %s38
      %44 = dma.hbm_to_vmem [thread:$0]  %s37, 8192, %s39, [#allocation6], 64, 64, 4
    $region9: #{tpu_custom_call.1} parent=1 // pred_fallthru
      _
    // Predicated region
    $region10: #{tpu_custom_call.1} parent=1 // pred_check
      _
    $region11: #{tpu_custom_call.1} parent=1 // pred_check_branch
      %46 = sbr.rel (0) target = $region13
    $region12: #{tpu_custom_call.1} parent=1 // pred_region
      _
    $region13: #{tpu_custom_call.1} parent=1 // pred_fallthru
      _
    // Predicated region
    $region14: #{tpu_custom_call.1} parent=1 // pred_check
      _
    $region15: #{tpu_custom_call.1} parent=1 // pred_check_branch
      %48 = sbr.rel (0) target = $region17
    $region16: #{tpu_custom_call.1} parent=1 // pred_region
      %50 = vsyncadd [#allocation6], 0
      %s51 = sshll.u32 %s3, 4
      %s52 = int_to_ptr.hbm [resolvable:$true] %s51
      %s53 = sshll.u32 [#allocation7], 4
      %s54 = int_to_ptr.vmem [resolvable:$true] %s53
      %59 = dma.hbm_to_vmem [thread:$0]  %s52, 1024, %s54, [#allocation6], 64, 64, 4
    $region17: #{tpu_custom_call.1} parent=1 // pred_fallthru
      _
    // Predicated region
    $region18: #{tpu_custom_call.1} parent=1 // pred_check
      _
    $region19: #{tpu_custom_call.1} parent=1 // pred_check_branch
      %61 = sbr.rel (0) target = $region21
    $region20: #{tpu_custom_call.1} parent=1 // pred_region
      _
    $region21: #{tpu_custom_call.1} parent=1 // pred_fallthru
      _
    // Predicated region
    $region22: #{tpu_custom_call.1} parent=1 // pred_check
      _
    $region23: #{tpu_custom_call.1} parent=1 // pred_check_branch
      %63 = sbr.rel (0) target = $region25
    $region24: #{tpu_custom_call.1} parent=1 // pred_region
      %65 = vsyncadd [#allocation9], 0
      %s66 = sshll.u32 %s5, 4
      %s67 = int_to_ptr.hbm [resolvable:$true] %s66
      %s68 = sshll.u32 [#allocation8], 4
      %s69 = int_to_ptr.vmem [resolvable:$true] %s68
      %74 = dma.hbm_to_vmem [thread:$0]  %s67, 1024, %s69, [#allocation9], 64, 64, 4
    $region25: #{tpu_custom_call.1} parent=1 // pred_fallthru
      _
    // Predicated region
    $region26: #{tpu_custom_call.1} parent=1 // pred_check
      _
    $region27: #{tpu_custom_call.1} parent=1 // pred_check_branch
      %76 = sbr.rel (0) target = $region29
    $region28: #{tpu_custom_call.1} parent=1 // pred_region
      _
    $region29: #{tpu_custom_call.1} parent=1 // pred_fallthru
      _
    // Predicated region
    $region30: #{tpu_custom_call.1} parent=1 // pred_check
      _
    $region31: #{tpu_custom_call.1} parent=1 // pred_check_branch
      %78 = sbr.rel (0) target = $region33
    $region32: #{tpu_custom_call.1} parent=1 // pred_region
      %80 = vsyncadd [#allocation9], 0
      %s81 = sshll.u32 %s7, 4
      %s82 = int_to_ptr.hbm [resolvable:$true] %s81
      %s83 = sshll.u32 [#allocation10], 4
      %s84 = int_to_ptr.vmem [resolvable:$true] %s83
      %89 = dma.hbm_to_vmem [thread:$0]  %s82, 8192, %s84, [#allocation9], 512, 512, 32
    $region33: #{tpu_custom_call.1} parent=1 // pred_fallthru
      _
    // Predicated region
    $region34: #{tpu_custom_call.1} parent=1 // pred_check
      _
    $region35: #{tpu_custom_call.1} parent=1 // pred_check_branch
      %91 = sbr.rel (0) target = $region37
    $region36: #{tpu_custom_call.1} parent=1 // pred_region
      %93 = vsyncadd [#allocation12], 0
      %s95 = sshll.u32 %s8, 4
      %s96 = int_to_ptr.hbm [resolvable:$true] %s95
      %s97 = sshll.u32 [#allocation11], 4
      %s98 = int_to_ptr.vmem [resolvable:$true] %s97
      %100 = dma.hbm_to_vmem [thread:$0]  %s96, 128, %s98, [#allocation12]
    $region37: #{tpu_custom_call.1} parent=1 // pred_fallthru
      _
    // Predicated region
    $region38: #{tpu_custom_call.1} parent=1 // pred_check
      _
    $region39: #{tpu_custom_call.1} parent=1 // pred_check_branch
      %102 = sbr.rel (0) target = $region41
    $region40: #{tpu_custom_call.1} parent=1 // pred_region
      %104 = dma.done [#allocation3], 2048
    $region41: #{tpu_custom_call.1} parent=1 // pred_fallthru
      _
    // Predicated region
    $region42: #{tpu_custom_call.1} parent=1 // pred_check
      _
    $region43: #{tpu_custom_call.1} parent=1 // pred_check_branch
      %106 = sbr.rel (0) target = $region45
    $region44: #{tpu_custom_call.1} parent=1 // pred_region
      %108 = dma.done [#allocation6], 8192
    $region45: #{tpu_custom_call.1} parent=1 // pred_fallthru
      _
    // Predicated region
    $region46: #{tpu_custom_call.1} parent=1 // pred_check
      _
    $region47: #{tpu_custom_call.1} parent=1 // pred_check_branch
      %110 = sbr.rel (0) target = $region49
    $region48: #{tpu_custom_call.1} parent=1 // pred_region
      %112 = dma.done [#allocation6], 1024
    $region49: #{tpu_custom_call.1} parent=1 // pred_fallthru
      _
    // Predicated region
    $region50: #{tpu_custom_call.1} parent=1 // pred_check
      _
    $region51: #{tpu_custom_call.1} parent=1 // pred_check_branch
      %114 = sbr.rel (0) target = $region53
    $region52: #{tpu_custom_call.1} parent=1 // pred_region
      %116 = dma.done [#allocation9], 1024
    $region53: #{tpu_custom_call.1} parent=1 // pred_fallthru
      _
    // Predicated region
    $region54: #{tpu_custom_call.1} parent=1 // pred_check
      _
    $region55: #{tpu_custom_call.1} parent=1 // pred_check_branch
      %118 = sbr.rel (0) target = $region57
    $region56: #{tpu_custom_call.1} parent=1 // pred_region
      %120 = dma.done [#allocation9], 8192
    $region57: #{tpu_custom_call.1} parent=1 // pred_fallthru
      _
    // Predicated region
    $region58: #{tpu_custom_call.1} parent=1 // pred_check
      _
    $region59: #{tpu_custom_call.1} parent=1 // pred_check_branch
      %122 = sbr.rel (0) target = $region61
    $region60: #{tpu_custom_call.1} parent=1 // pred_region
      %124 = dma.done [#allocation12], 128
    $region61: #{tpu_custom_call.1} parent=1 // pred_fallthru
      _
    %v125 = vld [vmem:[#allocation2] sm:$0xff]
    %v126 = vld [vmem:[#allocation2 + $0x8] sm:$0xff]
    %v127 = vld [vmem:[#allocation2 + $0x10] sm:$0xff]
    %v128 = vld [vmem:[#allocation2 + $0x18] sm:$0xff]
    %v129 = vld [vmem:[#allocation2 + $0x20] sm:$0xff]
    %v130 = vld [vmem:[#allocation2 + $0x28] sm:$0xff]
    %v131 = vld [vmem:[#allocation2 + $0x30] sm:$0xff]
    %v132 = vld [vmem:[#allocation2 + $0x38] sm:$0xff]
    %v133 = vld [vmem:[#allocation2 + $0x40] sm:$0xff]
    %v134 = vld [vmem:[#allocation2 + $0x48] sm:$0xff]
    %v135 = vld [vmem:[#allocation2 + $0x50] sm:$0xff]
    %v136 = vld [vmem:[#allocation2 + $0x58] sm:$0xff]
    %v137 = vld [vmem:[#allocation2 + $0x60] sm:$0xff]
    %v138 = vld [vmem:[#allocation2 + $0x68] sm:$0xff]
    %v139 = vld [vmem:[#allocation2 + $0x70] sm:$0xff]
    %v140 = vld [vmem:[#allocation2 + $0x78] sm:$0xff]
    %v141 = vpack.c.bf16 %v133, %v125
    %v142 = vpack.c.bf16 %v134, %v126
    %v143 = vpack.c.bf16 %v135, %v127
    %v144 = vpack.c.bf16 %v136, %v128
    %v145 = vpack.c.bf16 %v137, %v129
    %v146 = vpack.c.bf16 %v138, %v130
    %v147 = vpack.c.bf16 %v139, %v131
    %v148 = vpack.c.bf16 %v140, %v132
    %v149 = vld [vmem:[#allocation5] sm:$0xf]
    %v150 = vld [vmem:[#allocation5 + $0x4] sm:$0xf]
    %v151 = vld [vmem:[#allocation5 + $0x8] sm:$0xf]
    %v152 = vld [vmem:[#allocation5 + $0xc] sm:$0xf]
    %v153 = vld [vmem:[#allocation5 + $0x10] sm:$0xf]
    %v154 = vld [vmem:[#allocation5 + $0x14] sm:$0xf]
    %v155 = vld [vmem:[#allocation5 + $0x18] sm:$0xf]
    %v156 = vld [vmem:[#allocation5 + $0x1c] sm:$0xf]
    %v157 = vld [vmem:[#allocation5 + $0x20] sm:$0xf]
    %v158 = vld [vmem:[#allocation5 + $0x24] sm:$0xf]
    %v159 = vld [vmem:[#allocation5 + $0x28] sm:$0xf]
    %v160 = vld [vmem:[#allocation5 + $0x2c] sm:$0xf]
    %v161 = vld [vmem:[#allocation5 + $0x30] sm:$0xf]
    %v162 = vld [vmem:[#allocation5 + $0x34] sm:$0xf]
    %v163 = vld [vmem:[#allocation5 + $0x38] sm:$0xf]
    %v164 = vld [vmem:[#allocation5 + $0x3c] sm:$0xf]
    %v165 = vld [vmem:[#allocation5 + $0x40] sm:$0xf]
    %v166 = vld [vmem:[#allocation5 + $0x44] sm:$0xf]
    %v167 = vld [vmem:[#allocation5 + $0x48] sm:$0xf]
    %v168 = vld [vmem:[#allocation5 + $0x4c] sm:$0xf]
    %v169 = vld [vmem:[#allocation5 + $0x50] sm:$0xf]
    %v170 = vld [vmem:[#allocation5 + $0x54] sm:$0xf]
    %v171 = vld [vmem:[#allocation5 + $0x58] sm:$0xf]
    %v172 = vld [vmem:[#allocation5 + $0x5c] sm:$0xf]
    %v173 = vld [vmem:[#allocation5 + $0x60] sm:$0xf]
    %v174 = vld [vmem:[#allocation5 + $0x64] sm:$0xf]
    %v175 = vld [vmem:[#allocation5 + $0x68] sm:$0xf]
    %v176 = vld [vmem:[#allocation5 + $0x6c] sm:$0xf]
    %v177 = vld [vmem:[#allocation5 + $0x70] sm:$0xf]
    %v178 = vld [vmem:[#allocation5 + $0x74] sm:$0xf]
    %v179 = vld [vmem:[#allocation5 + $0x78] sm:$0xf]
    %v180 = vld [vmem:[#allocation5 + $0x7c] sm:$0xf]
    %v181 = vld [vmem:[#allocation5 + $0x80] sm:$0xf]
    %v182 = vld [vmem:[#allocation5 + $0x84] sm:$0xf]
    %v183 = vld [vmem:[#allocation5 + $0x88] sm:$0xf]
    %v184 = vld [vmem:[#allocation5 + $0x8c] sm:$0xf]
    %v185 = vld [vmem:[#allocation5 + $0x90] sm:$0xf]
    %v186 = vld [vmem:[#allocation5 + $0x94] sm:$0xf]
    %v187 = vld [vmem:[#allocation5 + $0x98] sm:$0xf]
    %v188 = vld [vmem:[#allocation5 + $0x9c] sm:$0xf]
    %v189 = vld [vmem:[#allocation5 + $0xa0] sm:$0xf]
    %v190 = vld [vmem:[#allocation5 + $0xa4] sm:$0xf]
    %v191 = vld [vmem:[#allocation5 + $0xa8] sm:$0xf]
    %v192 = vld [vmem:[#allocation5 + $0xac] sm:$0xf]
    %v193 = vld [vmem:[#allocation5 + $0xb0] sm:$0xf]
    %v194 = vld [vmem:[#allocation5 + $0xb4] sm:$0xf]
    %v195 = vld [vmem:[#allocation5 + $0xb8] sm:$0xf]
    %v196 = vld [vmem:[#allocation5 + $0xbc] sm:$0xf]
    %v197 = vld [vmem:[#allocation5 + $0xc0] sm:$0xf]
    %v198 = vld [vmem:[#allocation5 + $0xc4] sm:$0xf]
    %v199 = vld [vmem:[#allocation5 + $0xc8] sm:$0xf]
    %v200 = vld [vmem:[#allocation5 + $0xcc] sm:$0xf]
    %v201 = vld [vmem:[#allocation5 + $0xd0] sm:$0xf]
    %v202 = vld [vmem:[#allocation5 + $0xd4] sm:$0xf]
    %v203 = vld [vmem:[#allocation5 + $0xd8] sm:$0xf]
    %v204 = vld [vmem:[#allocation5 + $0xdc] sm:$0xf]
    %v205 = vld [vmem:[#allocation5 + $0xe0] sm:$0xf]
    %v206 = vld [vmem:[#allocation5 + $0xe4] sm:$0xf]
    %v207 = vld [vmem:[#allocation5 + $0xe8] sm:$0xf]
    %v208 = vld [vmem:[#allocation5 + $0xec] sm:$0xf]
    %v209 = vld [vmem:[#allocation5 + $0xf0] sm:$0xf]
    %v210 = vld [vmem:[#allocation5 + $0xf4] sm:$0xf]
    %v211 = vld [vmem:[#allocation5 + $0xf8] sm:$0xf]
    %v212 = vld [vmem:[#allocation5 + $0xfc] sm:$0xf]
    %v213 = vld [vmem:[#allocation5 + $0x100] sm:$0xf]
    %v214 = vld [vmem:[#allocation5 + $0x104] sm:$0xf]
    %v215 = vld [vmem:[#allocation5 + $0x108] sm:$0xf]
    %v216 = vld [vmem:[#allocation5 + $0x10c] sm:$0xf]
    %v217 = vld [vmem:[#allocation5 + $0x110] sm:$0xf]
    %v218 = vld [vmem:[#allocation5 + $0x114] sm:$0xf]
    %v219 = vld [vmem:[#allocation5 + $0x118] sm:$0xf]
    %v220 = vld [vmem:[#allocation5 + $0x11c] sm:$0xf]
    %v221 = vld [vmem:[#allocation5 + $0x120] sm:$0xf]
    %v222 = vld [vmem:[#allocation5 + $0x124] sm:$0xf]
    %v223 = vld [vmem:[#allocation5 + $0x128] sm:$0xf]
    %v224 = vld [vmem:[#allocation5 + $0x12c] sm:$0xf]
    %v225 = vld [vmem:[#allocation5 + $0x130] sm:$0xf]
    %v226 = vld [vmem:[#allocation5 + $0x134] sm:$0xf]
    %v227 = vld [vmem:[#allocation5 + $0x138] sm:$0xf]
    %v228 = vld [vmem:[#allocation5 + $0x13c] sm:$0xf]
    %v229 = vld [vmem:[#allocation5 + $0x140] sm:$0xf]
    %v230 = vld [vmem:[#allocation5 + $0x144] sm:$0xf]
    %v231 = vld [vmem:[#allocation5 + $0x148] sm:$0xf]
    %v232 = vld [vmem:[#allocation5 + $0x14c] sm:$0xf]
    %v233 = vld [vmem:[#allocation5 + $0x150] sm:$0xf]
    %v234 = vld [vmem:[#allocation5 + $0x154] sm:$0xf]
    %v235 = vld [vmem:[#allocation5 + $0x158] sm:$0xf]
    %v236 = vld [vmem:[#allocation5 + $0x15c] sm:$0xf]
    %v237 = vld [vmem:[#allocation5 + $0x160] sm:$0xf]
    %v238 = vld [vmem:[#allocation5 + $0x164] sm:$0xf]
    %v239 = vld [vmem:[#allocation5 + $0x168] sm:$0xf]
    %v240 = vld [vmem:[#allocation5 + $0x16c] sm:$0xf]
    %v241 = vld [vmem:[#allocation5 + $0x170] sm:$0xf]
    %v242 = vld [vmem:[#allocation5 + $0x174] sm:$0xf]
    %v243 = vld [vmem:[#allocation5 + $0x178] sm:$0xf]
    %v244 = vld [vmem:[#allocation5 + $0x17c] sm:$0xf]
    %v245 = vld [vmem:[#allocation5 + $0x180] sm:$0xf]
    %v246 = vld [vmem:[#allocation5 + $0x184] sm:$0xf]
    %v247 = vld [vmem:[#allocation5 + $0x188] sm:$0xf]
    %v248 = vld [vmem:[#allocation5 + $0x18c] sm:$0xf]
    %v249 = vld [vmem:[#allocation5 + $0x190] sm:$0xf]
    %v250 = vld [vmem:[#allocation5 + $0x194] sm:$0xf]
    %v251 = vld [vmem:[#allocation5 + $0x198] sm:$0xf]
    %v252 = vld [vmem:[#allocation5 + $0x19c] sm:$0xf]
    %v253 = vld [vmem:[#allocation5 + $0x1a0] sm:$0xf]
    %v254 = vld [vmem:[#allocation5 + $0x1a4] sm:$0xf]
    %v255 = vld [vmem:[#allocation5 + $0x1a8] sm:$0xf]
    %v256 = vld [vmem:[#allocation5 + $0x1ac] sm:$0xf]
    %v257 = vld [vmem:[#allocation5 + $0x1b0] sm:$0xf]
    %v258 = vld [vmem:[#allocation5 + $0x1b4] sm:$0xf]
    %v259 = vld [vmem:[#allocation5 + $0x1b8] sm:$0xf]
    %v260 = vld [vmem:[#allocation5 + $0x1bc] sm:$0xf]
    %v261 = vld [vmem:[#allocation5 + $0x1c0] sm:$0xf]
    %v262 = vld [vmem:[#allocation5 + $0x1c4] sm:$0xf]
    %v263 = vld [vmem:[#allocation5 + $0x1c8] sm:$0xf]
    %v264 = vld [vmem:[#allocation5 + $0x1cc] sm:$0xf]
    %v265 = vld [vmem:[#allocation5 + $0x1d0] sm:$0xf]
    %v266 = vld [vmem:[#allocation5 + $0x1d4] sm:$0xf]
    %v267 = vld [vmem:[#allocation5 + $0x1d8] sm:$0xf]
    %v268 = vld [vmem:[#allocation5 + $0x1dc] sm:$0xf]
    %v269 = vld [vmem:[#allocation5 + $0x1e0] sm:$0xf]
    %v270 = vld [vmem:[#allocation5 + $0x1e4] sm:$0xf]
    %v271 = vld [vmem:[#allocation5 + $0x1e8] sm:$0xf]
    %v272 = vld [vmem:[#allocation5 + $0x1ec] sm:$0xf]
    %v273 = vld [vmem:[#allocation5 + $0x1f0] sm:$0xf]
    %v274 = vld [vmem:[#allocation5 + $0x1f4] sm:$0xf]
    %v275 = vld [vmem:[#allocation5 + $0x1f8] sm:$0xf]
    %v276 = vld [vmem:[#allocation5 + $0x1fc] sm:$0xf]
    %v277 = vld [vmem:[%s2] sm:$0x1]
    %v279 = vperm.slane %v277, 0
    %v409 = vunpack.c.l.b16 %v149
    %v410 = vunpack.c.l.b16 %v150
    %v411 = vunpack.c.l.b16 %v151
    %v412 = vunpack.c.l.b16 %v152
    %v413 = vunpack.c.l.b16 %v153
    %v414 = vunpack.c.l.b16 %v154
    %v415 = vunpack.c.l.b16 %v155
    %v416 = vunpack.c.l.b16 %v156
    %v417 = vunpack.c.l.b16 %v157
    %v418 = vunpack.c.l.b16 %v158
    %v419 = vunpack.c.l.b16 %v159
    %v420 = vunpack.c.l.b16 %v160
    %v421 = vunpack.c.l.b16 %v161
    %v422 = vunpack.c.l.b16 %v162
    %v423 = vunpack.c.l.b16 %v163
    %v424 = vunpack.c.l.b16 %v164
    %v425 = vunpack.c.l.b16 %v165
    %v426 = vunpack.c.l.b16 %v166
    %v427 = vunpack.c.l.b16 %v167
    %v428 = vunpack.c.l.b16 %v168
    %v429 = vunpack.c.l.b16 %v169
    %v430 = vunpack.c.l.b16 %v170
    %v431 = vunpack.c.l.b16 %v171
    %v432 = vunpack.c.l.b16 %v172
    %v433 = vunpack.c.l.b16 %v173
    %v434 = vunpack.c.l.b16 %v174
    %v435 = vunpack.c.l.b16 %v175
    %v436 = vunpack.c.l.b16 %v176
    %v437 = vunpack.c.l.b16 %v177
    %v438 = vunpack.c.l.b16 %v178
    %v439 = vunpack.c.l.b16 %v179
    %v440 = vunpack.c.l.b16 %v180
    %v441 = vunpack.c.l.b16 %v181
    %v442 = vunpack.c.l.b16 %v182
    %v443 = vunpack.c.l.b16 %v183
    %v444 = vunpack.c.l.b16 %v184
    %v445 = vunpack.c.l.b16 %v185
    %v446 = vunpack.c.l.b16 %v186
    %v447 = vunpack.c.l.b16 %v187
    %v448 = vunpack.c.l.b16 %v188
    %v449 = vunpack.c.l.b16 %v189
    %v450 = vunpack.c.l.b16 %v190
    %v451 = vunpack.c.l.b16 %v191
    %v452 = vunpack.c.l.b16 %v192
    %v453 = vunpack.c.l.b16 %v193
    %v454 = vunpack.c.l.b16 %v194
    %v455 = vunpack.c.l.b16 %v195
    %v456 = vunpack.c.l.b16 %v196
    %v457 = vunpack.c.l.b16 %v197
    %v458 = vunpack.c.l.b16 %v198
    %v459 = vunpack.c.l.b16 %v199
    %v460 = vunpack.c.l.b16 %v200
    %v461 = vunpack.c.l.b16 %v201
    %v462 = vunpack.c.l.b16 %v202
    %v463 = vunpack.c.l.b16 %v203
    %v464 = vunpack.c.l.b16 %v204
    %v465 = vunpack.c.l.b16 %v205
    %v466 = vunpack.c.l.b16 %v206
    %v467 = vunpack.c.l.b16 %v207
    %v468 = vunpack.c.l.b16 %v208
    %v469 = vunpack.c.l.b16 %v209
    %v470 = vunpack.c.l.b16 %v210
    %v471 = vunpack.c.l.b16 %v211
    %v472 = vunpack.c.l.b16 %v212
    %v473 = vunpack.c.l.b16 %v213
    %v474 = vunpack.c.l.b16 %v214
    %v475 = vunpack.c.l.b16 %v215
    %v476 = vunpack.c.l.b16 %v216
    %v477 = vunpack.c.l.b16 %v217
    %v478 = vunpack.c.l.b16 %v218
    %v479 = vunpack.c.l.b16 %v219
    %v480 = vunpack.c.l.b16 %v220
    %v481 = vunpack.c.l.b16 %v221
    %v482 = vunpack.c.l.b16 %v222
    %v483 = vunpack.c.l.b16 %v223
    %v484 = vunpack.c.l.b16 %v224
    %v485 = vunpack.c.l.b16 %v225
    %v486 = vunpack.c.l.b16 %v226
    %v487 = vunpack.c.l.b16 %v227
    %v488 = vunpack.c.l.b16 %v228
    %v489 = vunpack.c.l.b16 %v229
    %v490 = vunpack.c.l.b16 %v230
    %v491 = vunpack.c.l.b16 %v231
    %v492 = vunpack.c.l.b16 %v232
    %v493 = vunpack.c.l.b16 %v233
    %v494 = vunpack.c.l.b16 %v234
    %v495 = vunpack.c.l.b16 %v235
    %v496 = vunpack.c.l.b16 %v236
    %v497 = vunpack.c.l.b16 %v237
    %v498 = vunpack.c.l.b16 %v238
    %v499 = vunpack.c.l.b16 %v239
    %v500 = vunpack.c.l.b16 %v240
    %v501 = vunpack.c.l.b16 %v241
    %v502 = vunpack.c.l.b16 %v242
    %v503 = vunpack.c.l.b16 %v243
    %v504 = vunpack.c.l.b16 %v244
    %v505 = vunpack.c.l.b16 %v245
    %v506 = vunpack.c.l.b16 %v246
    %v507 = vunpack.c.l.b16 %v247
    %v508 = vunpack.c.l.b16 %v248
    %v509 = vunpack.c.l.b16 %v249
    %v510 = vunpack.c.l.b16 %v250
    %v511 = vunpack.c.l.b16 %v251
    %v512 = vunpack.c.l.b16 %v252
    %v513 = vunpack.c.l.b16 %v253
    %v514 = vunpack.c.l.b16 %v254
    %v515 = vunpack.c.l.b16 %v255
    %v516 = vunpack.c.l.b16 %v256
    %v517 = vunpack.c.l.b16 %v257
    %v518 = vunpack.c.l.b16 %v258
    %v519 = vunpack.c.l.b16 %v259
    %v520 = vunpack.c.l.b16 %v260
    %v521 = vunpack.c.l.b16 %v261
    %v522 = vunpack.c.l.b16 %v262
    %v523 = vunpack.c.l.b16 %v263
    %v524 = vunpack.c.l.b16 %v264
    %v525 = vunpack.c.l.b16 %v265
    %v526 = vunpack.c.l.b16 %v266
    %v527 = vunpack.c.l.b16 %v267
    %v528 = vunpack.c.l.b16 %v268
    %v529 = vunpack.c.l.b16 %v269
    %v530 = vunpack.c.l.b16 %v270
    %v531 = vunpack.c.l.b16 %v271
    %v532 = vunpack.c.l.b16 %v272
    %v533 = vunpack.c.l.b16 %v273
    %v534 = vunpack.c.l.b16 %v274
    %v535 = vunpack.c.l.b16 %v275
    %v536 = vunpack.c.l.b16 %v276
    %v537 = vpack.c.b16 %v410, %v409
    %v538 = vpack.c.b16 %v412, %v411
    %v539 = vpack.c.b16 %v414, %v413
    %v540 = vpack.c.b16 %v416, %v415
    %v541 = vpack.c.b16 %v418, %v417
    %v542 = vpack.c.b16 %v420, %v419
    %v543 = vpack.c.b16 %v422, %v421
    %v544 = vpack.c.b16 %v424, %v423
    %v545 = vpack.c.b16 %v426, %v425
    %v546 = vpack.c.b16 %v428, %v427
    %v547 = vpack.c.b16 %v430, %v429
    %v548 = vpack.c.b16 %v432, %v431
    %v549 = vpack.c.b16 %v434, %v433
    %v550 = vpack.c.b16 %v436, %v435
    %v551 = vpack.c.b16 %v438, %v437
    %v552 = vpack.c.b16 %v440, %v439
    %v553 = vpack.c.b16 %v442, %v441
    %v554 = vpack.c.b16 %v444, %v443
    %v555 = vpack.c.b16 %v446, %v445
    %v556 = vpack.c.b16 %v448, %v447
    %v557 = vpack.c.b16 %v450, %v449
    %v558 = vpack.c.b16 %v452, %v451
    %v559 = vpack.c.b16 %v454, %v453
    %v560 = vpack.c.b16 %v456, %v455
    %v561 = vpack.c.b16 %v458, %v457
    %v562 = vpack.c.b16 %v460, %v459
    %v563 = vpack.c.b16 %v462, %v461
    %v564 = vpack.c.b16 %v464, %v463
    %v565 = vpack.c.b16 %v466, %v465
    %v566 = vpack.c.b16 %v468, %v467
    %v567 = vpack.c.b16 %v470, %v469
    %v568 = vpack.c.b16 %v472, %v471
    %v569 = vpack.c.b16 %v474, %v473
    %v570 = vpack.c.b16 %v476, %v475
    %v571 = vpack.c.b16 %v478, %v477
    %v572 = vpack.c.b16 %v480, %v479
    %v573 = vpack.c.b16 %v482, %v481
    %v574 = vpack.c.b16 %v484, %v483
    %v575 = vpack.c.b16 %v486, %v485
    %v576 = vpack.c.b16 %v488, %v487
    %v577 = vpack.c.b16 %v490, %v489
    %v578 = vpack.c.b16 %v492, %v491
    %v579 = vpack.c.b16 %v494, %v493
    %v580 = vpack.c.b16 %v496, %v495
    %v581 = vpack.c.b16 %v498, %v497
    %v582 = vpack.c.b16 %v500, %v499
    %v583 = vpack.c.b16 %v502, %v501
    %v584 = vpack.c.b16 %v504, %v503
    %v585 = vpack.c.b16 %v506, %v505
    %v586 = vpack.c.b16 %v508, %v507
    %v587 = vpack.c.b16 %v510, %v509
    %v588 = vpack.c.b16 %v512, %v511
    %v589 = vpack.c.b16 %v514, %v513
    %v590 = vpack.c.b16 %v516, %v515
    %v591 = vpack.c.b16 %v518, %v517
    %v592 = vpack.c.b16 %v520, %v519
    %v593 = vpack.c.b16 %v522, %v521
    %v594 = vpack.c.b16 %v524, %v523
    %v595 = vpack.c.b16 %v526, %v525
    %v596 = vpack.c.b16 %v528, %v527
    %v597 = vpack.c.b16 %v530, %v529
    %v598 = vpack.c.b16 %v532, %v531
    %v599 = vpack.c.b16 %v534, %v533
    %v600 = vpack.c.b16 %v536, %v535
    %665 = vmatpush.bf16.msra.mxu0 %v544
    %666 = vmatpush.bf16.msra.mxu0 %v543
    %667 = vmatpush.bf16.msra.mxu0 %v542
    %668 = vmatpush.bf16.msra.mxu0 %v541
    %669 = vmatpush.bf16.msra.mxu0 %v540
    %670 = vmatpush.bf16.msra.mxu0 %v539
    %671 = vmatpush.bf16.msra.mxu0 %v538
    %672 = vmatpush.bf16.msra.mxu0 %v537
    %673 = vmatmul.bf16.gmra.mxu0 %v141
    %v674 = vpop.f32.mrf.mxu0
    %v675 = vadd.f32 %v279, %v674
    %v676 = vpop.f32.mrf.mxu0
    %v677 = vadd.f32 %v279, %v676
    %678 = vdwg.mxu0
    %679 = vmatpush.bf16.msra.mxu0 %v552
    %680 = vmatpush.bf16.msra.mxu0 %v551
    %681 = vmatpush.bf16.msra.mxu0 %v550
    %682 = vmatpush.bf16.msra.mxu0 %v549
    %683 = vmatpush.bf16.msra.mxu0 %v548
    %684 = vmatpush.bf16.msra.mxu0 %v547
    %685 = vmatpush.bf16.msra.mxu0 %v546
    %686 = vmatpush.bf16.msra.mxu0 %v545
    %687 = vmatmul.bf16.gmra.mxu0 %v142
    %v688 = vpop.f32.mrf.mxu0
    %v689 = vadd.f32 %v675, %v688
    %v690 = vpop.f32.mrf.mxu0
    %v691 = vadd.f32 %v677, %v690
    %692 = vdwg.mxu0
    %693 = vmatpush.bf16.msra.mxu0 %v560
    %694 = vmatpush.bf16.msra.mxu0 %v559
    %695 = vmatpush.bf16.msra.mxu0 %v558
    %696 = vmatpush.bf16.msra.mxu0 %v557
    %697 = vmatpush.bf16.msra.mxu0 %v556
    %698 = vmatpush.bf16.msra.mxu0 %v555
    %699 = vmatpush.bf16.msra.mxu0 %v554
    %700 = vmatpush.bf16.msra.mxu0 %v553
    %701 = vmatmul.bf16.gmra.mxu0 %v143
    %v702 = vpop.f32.mrf.mxu0
    %v703 = vadd.f32 %v689, %v702
    %v704 = vpop.f32.mrf.mxu0
    %v705 = vadd.f32 %v691, %v704
    %706 = vdwg.mxu0
    %707 = vmatpush.bf16.msra.mxu0 %v568
    %708 = vmatpush.bf16.msra.mxu0 %v567
    %709 = vmatpush.bf16.msra.mxu0 %v566
    %710 = vmatpush.bf16.msra.mxu0 %v565
    %711 = vmatpush.bf16.msra.mxu0 %v564
    %712 = vmatpush.bf16.msra.mxu0 %v563
    %713 = vmatpush.bf16.msra.mxu0 %v562
    %714 = vmatpush.bf16.msra.mxu0 %v561
    %715 = vmatmul.bf16.gmra.mxu0 %v144
    %v716 = vpop.f32.mrf.mxu0
    %v717 = vadd.f32 %v703, %v716
    %v718 = vpop.f32.mrf.mxu0
    %v719 = vadd.f32 %v705, %v718
    %720 = vdwg.mxu0
    %721 = vmatpush.bf16.msra.mxu0 %v576
    %722 = vmatpush.bf16.msra.mxu0 %v575
    %723 = vmatpush.bf16.msra.mxu0 %v574
    %724 = vmatpush.bf16.msra.mxu0 %v573
    %725 = vmatpush.bf16.msra.mxu0 %v572
    %726 = vmatpush.bf16.msra.mxu0 %v571
    %727 = vmatpush.bf16.msra.mxu0 %v570
    %728 = vmatpush.bf16.msra.mxu0 %v569
    %729 = vmatmul.bf16.gmra.mxu0 %v145
    %v730 = vpop.f32.mrf.mxu0
    %v731 = vadd.f32 %v717, %v730
    %v732 = vpop.f32.mrf.mxu0
    %v733 = vadd.f32 %v719, %v732
    %734 = vdwg.mxu0
    %735 = vmatpush.bf16.msra.mxu0 %v584
    %736 = vmatpush.bf16.msra.mxu0 %v583
    %737 = vmatpush.bf16.msra.mxu0 %v582
    %738 = vmatpush.bf16.msra.mxu0 %v581
    %739 = vmatpush.bf16.msra.mxu0 %v580
    %740 = vmatpush.bf16.msra.mxu0 %v579
    %741 = vmatpush.bf16.msra.mxu0 %v578
    %742 = vmatpush.bf16.msra.mxu0 %v577
    %743 = vmatmul.bf16.gmra.mxu0 %v146
    %v744 = vpop.f32.mrf.mxu0
    %v745 = vadd.f32 %v731, %v744
    %v746 = vpop.f32.mrf.mxu0
    %v747 = vadd.f32 %v733, %v746
    %748 = vdwg.mxu0
    %749 = vmatpush.bf16.msra.mxu0 %v592
    %750 = vmatpush.bf16.msra.mxu0 %v591
    %751 = vmatpush.bf16.msra.mxu0 %v590
    %752 = vmatpush.bf16.msra.mxu0 %v589
    %753 = vmatpush.bf16.msra.mxu0 %v588
    %754 = vmatpush.bf16.msra.mxu0 %v587
    %755 = vmatpush.bf16.msra.mxu0 %v586
    %756 = vmatpush.bf16.msra.mxu0 %v585
    %757 = vmatmul.bf16.gmra.mxu0 %v147
    %v758 = vpop.f32.mrf.mxu0
    %v759 = vadd.f32 %v745, %v758
    %v760 = vpop.f32.mrf.mxu0
    %v761 = vadd.f32 %v747, %v760
    %762 = vdwg.mxu0
    %763 = vmatpush.bf16.msra.mxu0 %v600
    %764 = vmatpush.bf16.msra.mxu0 %v599
    %765 = vmatpush.bf16.msra.mxu0 %v598
    %766 = vmatpush.bf16.msra.mxu0 %v597
    %767 = vmatpush.bf16.msra.mxu0 %v596
    %768 = vmatpush.bf16.msra.mxu0 %v595
    %769 = vmatpush.bf16.msra.mxu0 %v594
    %770 = vmatpush.bf16.msra.mxu0 %v593
    %771 = vmatmul.bf16.gmra.mxu0 %v148
    %v772 = vpop.f32.mrf.mxu0
    %v773 = vadd.f32 %v759, %v772
    %v774 = vpop.f32.mrf.mxu0
    %v775 = vadd.f32 %v761, %v774
    %776 = vdwg.mxu0
    %v777 = vmax.f32 %v773, 0.0
    %v778 = vmax.f32 %v775, 0.0
    %v779 = vpack.c.bf16 %v778, %v777
    %v780 = vld [vmem:[#allocation7] sm:$0xf]
    %v781 = vld [vmem:[#allocation7 + $0x4] sm:$0xf]
    %v782 = vld [vmem:[#allocation7 + $0x8] sm:$0xf]
    %v783 = vld [vmem:[#allocation7 + $0xc] sm:$0xf]
    %v784 = vld [vmem:[#allocation7 + $0x10] sm:$0xf]
    %v785 = vld [vmem:[#allocation7 + $0x14] sm:$0xf]
    %v786 = vld [vmem:[#allocation7 + $0x18] sm:$0xf]
    %v787 = vld [vmem:[#allocation7 + $0x1c] sm:$0xf]
    %v788 = vld [vmem:[#allocation7 + $0x20] sm:$0xf]
    %v789 = vld [vmem:[#allocation7 + $0x24] sm:$0xf]
    %v790 = vld [vmem:[#allocation7 + $0x28] sm:$0xf]
    %v791 = vld [vmem:[#allocation7 + $0x2c] sm:$0xf]
    %v792 = vld [vmem:[#allocation7 + $0x30] sm:$0xf]
    %v793 = vld [vmem:[#allocation7 + $0x34] sm:$0xf]
    %v794 = vld [vmem:[#allocation7 + $0x38] sm:$0xf]
    %v795 = vld [vmem:[#allocation7 + $0x3c] sm:$0xf]
    %v796 = vld [vmem:[%s4] sm:$0x1]
    %v798 = vperm.slane %v796, 0
    %v816 = vunpack.c.l.b16 %v780
    %v817 = vunpack.c.l.b16 %v781
    %v818 = vunpack.c.l.b16 %v782
    %v819 = vunpack.c.l.b16 %v783
    %v820 = vunpack.c.l.b16 %v784
    %v821 = vunpack.c.l.b16 %v785
    %v822 = vunpack.c.l.b16 %v786
    %v823 = vunpack.c.l.b16 %v787
    %v824 = vunpack.c.l.b16 %v788
    %v825 = vunpack.c.l.b16 %v789
    %v826 = vunpack.c.l.b16 %v790
    %v827 = vunpack.c.l.b16 %v791
    %v828 = vunpack.c.l.b16 %v792
    %v829 = vunpack.c.l.b16 %v793
    %v830 = vunpack.c.l.b16 %v794
    %v831 = vunpack.c.l.b16 %v795
    %v832 = vpack.c.b16 %v817, %v816
    %v833 = vpack.c.b16 %v819, %v818
    %v834 = vpack.c.b16 %v821, %v820
    %v835 = vpack.c.b16 %v823, %v822
    %v836 = vpack.c.b16 %v825, %v824
    %v837 = vpack.c.b16 %v827, %v826
    %v838 = vpack.c.b16 %v829, %v828
    %v839 = vpack.c.b16 %v831, %v830
    %848 = vmatpush.bf16.msra.mxu0 %v839
    %849 = vmatpush.bf16.msra.mxu0 %v838
    %850 = vmatpush.bf16.msra.mxu0 %v837
    %851 = vmatpush.bf16.msra.mxu0 %v836
    %852 = vmatpush.bf16.msra.mxu0 %v835
    %853 = vmatpush.bf16.msra.mxu0 %v834
    %854 = vmatpush.bf16.msra.mxu0 %v833
    %855 = vmatpush.bf16.msra.mxu0 %v832
    %856 = vmatmul.bf16.gmra.mxu0 %v779
    %v857 = vpop.f32.mrf.mxu0
    %v858 = vadd.f32 %v798, %v857
    %v859 = vpop.f32.mrf.mxu0
    %v860 = vadd.f32 %v798, %v859
    %861 = vdwg.mxu0
    %v862 = vmax.f32 %v858, 0.0
    %v863 = vmax.f32 %v860, 0.0
    %v864 = vpack.c.bf16 %v863, %v862
    %v865 = vld [vmem:[#allocation8] sm:$0xf]
    %v866 = vld [vmem:[#allocation8 + $0x4] sm:$0xf]
    %v867 = vld [vmem:[#allocation8 + $0x8] sm:$0xf]
    %v868 = vld [vmem:[#allocation8 + $0xc] sm:$0xf]
    %v869 = vld [vmem:[#allocation8 + $0x10] sm:$0xf]
    %v870 = vld [vmem:[#allocation8 + $0x14] sm:$0xf]
    %v871 = vld [vmem:[#allocation8 + $0x18] sm:$0xf]
    %v872 = vld [vmem:[#allocation8 + $0x1c] sm:$0xf]
    %v873 = vld [vmem:[#allocation8 + $0x20] sm:$0xf]
    %v874 = vld [vmem:[#allocation8 + $0x24] sm:$0xf]
    %v875 = vld [vmem:[#allocation8 + $0x28] sm:$0xf]
    %v876 = vld [vmem:[#allocation8 + $0x2c] sm:$0xf]
    %v877 = vld [vmem:[#allocation8 + $0x30] sm:$0xf]
    %v878 = vld [vmem:[#allocation8 + $0x34] sm:$0xf]
    %v879 = vld [vmem:[#allocation8 + $0x38] sm:$0xf]
    %v880 = vld [vmem:[#allocation8 + $0x3c] sm:$0xf]
    %v881 = vld [vmem:[%s6] sm:$0x1]
    %v883 = vperm.slane %v881, 0
    %v901 = vunpack.c.l.b16 %v865
    %v902 = vunpack.c.l.b16 %v866
    %v903 = vunpack.c.l.b16 %v867
    %v904 = vunpack.c.l.b16 %v868
    %v905 = vunpack.c.l.b16 %v869
    %v906 = vunpack.c.l.b16 %v870
    %v907 = vunpack.c.l.b16 %v871
    %v908 = vunpack.c.l.b16 %v872
    %v909 = vunpack.c.l.b16 %v873
    %v910 = vunpack.c.l.b16 %v874
    %v911 = vunpack.c.l.b16 %v875
    %v912 = vunpack.c.l.b16 %v876
    %v913 = vunpack.c.l.b16 %v877
    %v914 = vunpack.c.l.b16 %v878
    %v915 = vunpack.c.l.b16 %v879
    %v916 = vunpack.c.l.b16 %v880
    %v917 = vpack.c.b16 %v902, %v901
    %v918 = vpack.c.b16 %v904, %v903
    %v919 = vpack.c.b16 %v906, %v905
    %v920 = vpack.c.b16 %v908, %v907
    %v921 = vpack.c.b16 %v910, %v909
    %v922 = vpack.c.b16 %v912, %v911
    %v923 = vpack.c.b16 %v914, %v913
    %v924 = vpack.c.b16 %v916, %v915
    %933 = vmatpush.bf16.msra.mxu0 %v924
    %934 = vmatpush.bf16.msra.mxu0 %v923
    %935 = vmatpush.bf16.msra.mxu0 %v922
    %936 = vmatpush.bf16.msra.mxu0 %v921
    %937 = vmatpush.bf16.msra.mxu0 %v920
    %938 = vmatpush.bf16.msra.mxu0 %v919
    %939 = vmatpush.bf16.msra.mxu0 %v918
    %940 = vmatpush.bf16.msra.mxu0 %v917
    %941 = vmatmul.bf16.gmra.mxu0 %v864
    %v942 = vpop.f32.mrf.mxu0
    %v943 = vadd.f32 %v883, %v942
    %v944 = vpop.f32.mrf.mxu0
    %v945 = vadd.f32 %v883, %v944
    %946 = vdwg.mxu0
    %v947 = vmax.f32 %v943, 0.0
    %v948 = vmax.f32 %v945, 0.0
    %v949 = vpack.c.bf16 %v948, %v947
    %v950 = vld [vmem:[#allocation10] sm:$0xff]
    %v951 = vld [vmem:[#allocation10 + $0x8] sm:$0xff]
    %v952 = vld [vmem:[#allocation10 + $0x10] sm:$0xff]
    %v953 = vld [vmem:[#allocation10 + $0x18] sm:$0xff]
    %v954 = vld [vmem:[#allocation10 + $0x20] sm:$0xff]
    %v955 = vld [vmem:[#allocation10 + $0x28] sm:$0xff]
    %v956 = vld [vmem:[#allocation10 + $0x30] sm:$0xff]
    %v957 = vld [vmem:[#allocation10 + $0x38] sm:$0xff]
    %v958 = vld [vmem:[#allocation10 + $0x40] sm:$0xff]
    %v959 = vld [vmem:[#allocation10 + $0x48] sm:$0xff]
    %v960 = vld [vmem:[#allocation10 + $0x50] sm:$0xff]
    %v961 = vld [vmem:[#allocation10 + $0x58] sm:$0xff]
    %v962 = vld [vmem:[#allocation10 + $0x60] sm:$0xff]
    %v963 = vld [vmem:[#allocation10 + $0x68] sm:$0xff]
    %v964 = vld [vmem:[#allocation10 + $0x70] sm:$0xff]
    %v965 = vld [vmem:[#allocation10 + $0x78] sm:$0xff]
    %v966 = vld [vmem:[#allocation10 + $0x80] sm:$0xff]
    %v967 = vld [vmem:[#allocation10 + $0x88] sm:$0xff]
    %v968 = vld [vmem:[#allocation10 + $0x90] sm:$0xff]
    %v969 = vld [vmem:[#allocation10 + $0x98] sm:$0xff]
    %v970 = vld [vmem:[#allocation10 + $0xa0] sm:$0xff]
    %v971 = vld [vmem:[#allocation10 + $0xa8] sm:$0xff]
    %v972 = vld [vmem:[#allocation10 + $0xb0] sm:$0xff]
    %v973 = vld [vmem:[#allocation10 + $0xb8] sm:$0xff]
    %v974 = vld [vmem:[#allocation10 + $0xc0] sm:$0xff]
    %v975 = vld [vmem:[#allocation10 + $0xc8] sm:$0xff]
    %v976 = vld [vmem:[#allocation10 + $0xd0] sm:$0xff]
    %v977 = vld [vmem:[#allocation10 + $0xd8] sm:$0xff]
    %v978 = vld [vmem:[#allocation10 + $0xe0] sm:$0xff]
    %v979 = vld [vmem:[#allocation10 + $0xe8] sm:$0xff]
    %v980 = vld [vmem:[#allocation10 + $0xf0] sm:$0xff]
    %v981 = vld [vmem:[#allocation10 + $0xf8] sm:$0xff]
    %v982 = vld [vmem:[#allocation10 + $0x100] sm:$0xff]
    %v983 = vld [vmem:[#allocation10 + $0x108] sm:$0xff]
    %v984 = vld [vmem:[#allocation10 + $0x110] sm:$0xff]
    %v985 = vld [vmem:[#allocation10 + $0x118] sm:$0xff]
    %v986 = vld [vmem:[#allocation10 + $0x120] sm:$0xff]
    %v987 = vld [vmem:[#allocation10 + $0x128] sm:$0xff]
    %v988 = vld [vmem:[#allocation10 + $0x130] sm:$0xff]
    %v989 = vld [vmem:[#allocation10 + $0x138] sm:$0xff]
    %v990 = vld [vmem:[#allocation10 + $0x140] sm:$0xff]
    %v991 = vld [vmem:[#allocation10 + $0x148] sm:$0xff]
    %v992 = vld [vmem:[#allocation10 + $0x150] sm:$0xff]
    %v993 = vld [vmem:[#allocation10 + $0x158] sm:$0xff]
    %v994 = vld [vmem:[#allocation10 + $0x160] sm:$0xff]
    %v995 = vld [vmem:[#allocation10 + $0x168] sm:$0xff]
    %v996 = vld [vmem:[#allocation10 + $0x170] sm:$0xff]
    %v997 = vld [vmem:[#allocation10 + $0x178] sm:$0xff]
    %v998 = vld [vmem:[#allocation10 + $0x180] sm:$0xff]
    %v999 = vld [vmem:[#allocation10 + $0x188] sm:$0xff]
    %v1000 = vld [vmem:[#allocation10 + $0x190] sm:$0xff]
    %v1001 = vld [vmem:[#allocation10 + $0x198] sm:$0xff]
    %v1002 = vld [vmem:[#allocation10 + $0x1a0] sm:$0xff]
    %v1003 = vld [vmem:[#allocation10 + $0x1a8] sm:$0xff]
    %v1004 = vld [vmem:[#allocation10 + $0x1b0] sm:$0xff]
    %v1005 = vld [vmem:[#allocation10 + $0x1b8] sm:$0xff]
    %v1006 = vld [vmem:[#allocation10 + $0x1c0] sm:$0xff]
    %v1007 = vld [vmem:[#allocation10 + $0x1c8] sm:$0xff]
    %v1008 = vld [vmem:[#allocation10 + $0x1d0] sm:$0xff]
    %v1009 = vld [vmem:[#allocation10 + $0x1d8] sm:$0xff]
    %v1010 = vld [vmem:[#allocation10 + $0x1e0] sm:$0xff]
    %v1011 = vld [vmem:[#allocation10 + $0x1e8] sm:$0xff]
    %v1012 = vld [vmem:[#allocation10 + $0x1f0] sm:$0xff]
    %v1013 = vld [vmem:[#allocation10 + $0x1f8] sm:$0xff]
    %v1014 = vld [vmem:[#allocation11] sm:$0xff]
    %v1016 = vperm.slane %v1014, 0
    %v1017 = vperm.slane %v1014, 1
    %v1018 = vperm.slane %v1014, 2
    %v1019 = vperm.slane %v1014, 3
    %v1020 = vperm.slane %v1014, 4
    %v1021 = vperm.slane %v1014, 5
    %v1022 = vperm.slane %v1014, 6
    %v1023 = vperm.slane %v1014, 7
    %v1096 = vunpack.c.l.b16 %v950
    %v1097 = vunpack.c.h.b16 %v950
    %v1098 = vunpack.c.l.b16 %v951
    %v1099 = vunpack.c.h.b16 %v951
    %v1100 = vunpack.c.l.b16 %v952
    %v1101 = vunpack.c.h.b16 %v952
    %v1102 = vunpack.c.l.b16 %v953
    %v1103 = vunpack.c.h.b16 %v953
    %v1104 = vunpack.c.l.b16 %v954
    %v1105 = vunpack.c.h.b16 %v954
    %v1106 = vunpack.c.l.b16 %v955
    %v1107 = vunpack.c.h.b16 %v955
    %v1108 = vunpack.c.l.b16 %v956
    %v1109 = vunpack.c.h.b16 %v956
    %v1110 = vunpack.c.l.b16 %v957
    %v1111 = vunpack.c.h.b16 %v957
    %v1112 = vunpack.c.l.b16 %v958
    %v1113 = vunpack.c.h.b16 %v958
    %v1114 = vunpack.c.l.b16 %v959
    %v1115 = vunpack.c.h.b16 %v959
    %v1116 = vunpack.c.l.b16 %v960
    %v1117 = vunpack.c.h.b16 %v960
    %v1118 = vunpack.c.l.b16 %v961
    %v1119 = vunpack.c.h.b16 %v961
    %v1120 = vunpack.c.l.b16 %v962
    %v1121 = vunpack.c.h.b16 %v962
    %v1122 = vunpack.c.l.b16 %v963
    %v1123 = vunpack.c.h.b16 %v963
    %v1124 = vunpack.c.l.b16 %v964
    %v1125 = vunpack.c.h.b16 %v964
    %v1126 = vunpack.c.l.b16 %v965
    %v1127 = vunpack.c.h.b16 %v965
    %v1128 = vunpack.c.l.b16 %v966
    %v1129 = vunpack.c.h.b16 %v966
    %v1130 = vunpack.c.l.b16 %v967
    %v1131 = vunpack.c.h.b16 %v967
    %v1132 = vunpack.c.l.b16 %v968
    %v1133 = vunpack.c.h.b16 %v968
    %v1134 = vunpack.c.l.b16 %v969
    %v1135 = vunpack.c.h.b16 %v969
    %v1136 = vunpack.c.l.b16 %v970
    %v1137 = vunpack.c.h.b16 %v970
    %v1138 = vunpack.c.l.b16 %v971
    %v1139 = vunpack.c.h.b16 %v971
    %v1140 = vunpack.c.l.b16 %v972
    %v1141 = vunpack.c.h.b16 %v972
    %v1142 = vunpack.c.l.b16 %v973
    %v1143 = vunpack.c.h.b16 %v973
    %v1144 = vunpack.c.l.b16 %v974
    %v1145 = vunpack.c.h.b16 %v974
    %v1146 = vunpack.c.l.b16 %v975
    %v1147 = vunpack.c.h.b16 %v975
    %v1148 = vunpack.c.l.b16 %v976
    %v1149 = vunpack.c.h.b16 %v976
    %v1150 = vunpack.c.l.b16 %v977
    %v1151 = vunpack.c.h.b16 %v977
    %v1152 = vunpack.c.l.b16 %v978
    %v1153 = vunpack.c.h.b16 %v978
    %v1154 = vunpack.c.l.b16 %v979
    %v1155 = vunpack.c.h.b16 %v979
    %v1156 = vunpack.c.l.b16 %v980
    %v1157 = vunpack.c.h.b16 %v980
    %v1158 = vunpack.c.l.b16 %v981
    %v1159 = vunpack.c.h.b16 %v981
    %v1160 = vunpack.c.l.b16 %v982
    %v1161 = vunpack.c.h.b16 %v982
    %v1162 = vunpack.c.l.b16 %v983
    %v1163 = vunpack.c.h.b16 %v983
    %v1164 = vunpack.c.l.b16 %v984
    %v1165 = vunpack.c.h.b16 %v984
    %v1166 = vunpack.c.l.b16 %v985
    %v1167 = vunpack.c.h.b16 %v985
    %v1168 = vunpack.c.l.b16 %v986
    %v1169 = vunpack.c.h.b16 %v986
    %v1170 = vunpack.c.l.b16 %v987
    %v1171 = vunpack.c.h.b16 %v987
    %v1172 = vunpack.c.l.b16 %v988
    %v1173 = vunpack.c.h.b16 %v988
    %v1174 = vunpack.c.l.b16 %v989
    %v1175 = vunpack.c.h.b16 %v989
    %v1176 = vunpack.c.l.b16 %v990
    %v1177 = vunpack.c.h.b16 %v990
    %v1178 = vunpack.c.l.b16 %v991
    %v1179 = vunpack.c.h.b16 %v991
    %v1180 = vunpack.c.l.b16 %v992
    %v1181 = vunpack.c.h.b16 %v992
    %v1182 = vunpack.c.l.b16 %v993
    %v1183 = vunpack.c.h.b16 %v993
    %v1184 = vunpack.c.l.b16 %v994
    %v1185 = vunpack.c.h.b16 %v994
    %v1186 = vunpack.c.l.b16 %v995
    %v1187 = vunpack.c.h.b16 %v995
    %v1188 = vunpack.c.l.b16 %v996
    %v1189 = vunpack.c.h.b16 %v996
    %v1190 = vunpack.c.l.b16 %v997
    %v1191 = vunpack.c.h.b16 %v997
    %v1192 = vunpack.c.l.b16 %v998
    %v1193 = vunpack.c.h.b16 %v998
    %v1194 = vunpack.c.l.b16 %v999
    %v1195 = vunpack.c.h.b16 %v999
    %v1196 = vunpack.c.l.b16 %v1000
    %v1197 = vunpack.c.h.b16 %v1000
    %v1198 = vunpack.c.l.b16 %v1001
    %v1199 = vunpack.c.h.b16 %v1001
    %v1200 = vunpack.c.l.b16 %v1002
    %v1201 = vunpack.c.h.b16 %v1002
    %v1202 = vunpack.c.l.b16 %v1003
    %v1203 = vunpack.c.h.b16 %v1003
    %v1204 = vunpack.c.l.b16 %v1004
    %v1205 = vunpack.c.h.b16 %v1004
    %v1206 = vunpack.c.l.b16 %v1005
    %v1207 = vunpack.c.h.b16 %v1005
    %v1208 = vunpack.c.l.b16 %v1006
    %v1209 = vunpack.c.h.b16 %v1006
    %v1210 = vunpack.c.l.b16 %v1007
    %v1211 = vunpack.c.h.b16 %v1007
    %v1212 = vunpack.c.l.b16 %v1008
    %v1213 = vunpack.c.h.b16 %v1008
    %v1214 = vunpack.c.l.b16 %v1009
    %v1215 = vunpack.c.h.b16 %v1009
    %v1216 = vunpack.c.l.b16 %v1010
    %v1217 = vunpack.c.h.b16 %v1010
    %v1218 = vunpack.c.l.b16 %v1011
    %v1219 = vunpack.c.h.b16 %v1011
    %v1220 = vunpack.c.l.b16 %v1012
    %v1221 = vunpack.c.h.b16 %v1012
    %v1222 = vunpack.c.l.b16 %v1013
    %v1223 = vunpack.c.h.b16 %v1013
    %v1224 = vpack.c.b16 %v1104, %v1096
    %v1225 = vpack.c.b16 %v1105, %v1097
    %v1226 = vpack.c.b16 %v1106, %v1098
    %v1227 = vpack.c.b16 %v1107, %v1099
    %v1228 = vpack.c.b16 %v1108, %v1100
    %v1229 = vpack.c.b16 %v1109, %v1101
    %v1230 = vpack.c.b16 %v1110, %v1102
    %v1231 = vpack.c.b16 %v1111, %v1103
    %v1232 = vpack.c.b16 %v1120, %v1112
    %v1233 = vpack.c.b16 %v1121, %v1113
    %v1234 = vpack.c.b16 %v1122, %v1114
    %v1235 = vpack.c.b16 %v1123, %v1115
    %v1236 = vpack.c.b16 %v1124, %v1116
    %v1237 = vpack.c.b16 %v1125, %v1117
    %v1238 = vpack.c.b16 %v1126, %v1118
    %v1239 = vpack.c.b16 %v1127, %v1119
    %v1240 = vpack.c.b16 %v1136, %v1128
    %v1241 = vpack.c.b16 %v1137, %v1129
    %v1242 = vpack.c.b16 %v1138, %v1130
    %v1243 = vpack.c.b16 %v1139, %v1131
    %v1244 = vpack.c.b16 %v1140, %v1132
    %v1245 = vpack.c.b16 %v1141, %v1133
    %v1246 = vpack.c.b16 %v1142, %v1134
    %v1247 = vpack.c.b16 %v1143, %v1135
    %v1248 = vpack.c.b16 %v1152, %v1144
    %v1249 = vpack.c.b16 %v1153, %v1145
    %v1250 = vpack.c.b16 %v1154, %v1146
    %v1251 = vpack.c.b16 %v1155, %v1147
    %v1252 = vpack.c.b16 %v1156, %v1148
    %v1253 = vpack.c.b16 %v1157, %v1149
    %v1254 = vpack.c.b16 %v1158, %v1150
    %v1255 = vpack.c.b16 %v1159, %v1151
    %v1256 = vpack.c.b16 %v1168, %v1160
    %v1257 = vpack.c.b16 %v1169, %v1161
    %v1258 = vpack.c.b16 %v1170, %v1162
    %v1259 = vpack.c.b16 %v1171, %v1163
    %v1260 = vpack.c.b16 %v1172, %v1164
    %v1261 = vpack.c.b16 %v1173, %v1165
    %v1262 = vpack.c.b16 %v1174, %v1166
    %v1263 = vpack.c.b16 %v1175, %v1167
    %v1264 = vpack.c.b16 %v1184, %v1176
    %v1265 = vpack.c.b16 %v1185, %v1177
    %v1266 = vpack.c.b16 %v1186, %v1178
    %v1267 = vpack.c.b16 %v1187, %v1179
    %v1268 = vpack.c.b16 %v1188, %v1180
    %v1269 = vpack.c.b16 %v1189, %v1181
    %v1270 = vpack.c.b16 %v1190, %v1182
    %v1271 = vpack.c.b16 %v1191, %v1183
    %v1272 = vpack.c.b16 %v1200, %v1192
    %v1273 = vpack.c.b16 %v1201, %v1193
    %v1274 = vpack.c.b16 %v1202, %v1194
    %v1275 = vpack.c.b16 %v1203, %v1195
    %v1276 = vpack.c.b16 %v1204, %v1196
    %v1277 = vpack.c.b16 %v1205, %v1197
    %v1278 = vpack.c.b16 %v1206, %v1198
    %v1279 = vpack.c.b16 %v1207, %v1199
    %v1280 = vpack.c.b16 %v1216, %v1208
    %v1281 = vpack.c.b16 %v1217, %v1209
    %v1282 = vpack.c.b16 %v1218, %v1210
    %v1283 = vpack.c.b16 %v1219, %v1211
    %v1284 = vpack.c.b16 %v1220, %v1212
    %v1285 = vpack.c.b16 %v1221, %v1213
    %v1286 = vpack.c.b16 %v1222, %v1214
    %v1287 = vpack.c.b16 %v1223, %v1215
    %1352 = vmatpush.bf16.msra.mxu0 %v1280
    %1353 = vmatpush.bf16.msra.mxu0 %v1272
    %1354 = vmatpush.bf16.msra.mxu0 %v1264
    %1355 = vmatpush.bf16.msra.mxu0 %v1256
    %1356 = vmatpush.bf16.msra.mxu0 %v1248
    %1357 = vmatpush.bf16.msra.mxu0 %v1240
    %1358 = vmatpush.bf16.msra.mxu0 %v1232
    %1359 = vmatpush.bf16.msra.mxu0 %v1224
    %1360 = vmatmul.bf16.gmra.mxu0 %v949
    %v1361 = vpop.f32.mrf.mxu0
    %v1362 = vadd.f32 %v1016, %v1361
    %v1363 = vpop.f32.mrf.mxu0
    %v1364 = vadd.f32 %v1016, %v1363
    %1365 = vdwg.mxu0
    %1366 = vmatpush.bf16.msra.mxu0 %v1281
    %1367 = vmatpush.bf16.msra.mxu0 %v1273
    %1368 = vmatpush.bf16.msra.mxu0 %v1265
    %1369 = vmatpush.bf16.msra.mxu0 %v1257
    %1370 = vmatpush.bf16.msra.mxu0 %v1249
    %1371 = vmatpush.bf16.msra.mxu0 %v1241
    %1372 = vmatpush.bf16.msra.mxu0 %v1233
    %1373 = vmatpush.bf16.msra.mxu0 %v1225
    %1374 = vmatmul.bf16.gmra.mxu0 %v949
    %v1375 = vpop.f32.mrf.mxu0
    %v1376 = vadd.f32 %v1017, %v1375
    %v1377 = vpop.f32.mrf.mxu0
    %v1378 = vadd.f32 %v1017, %v1377
    %1379 = vdwg.mxu0
    %1380 = vmatpush.bf16.msra.mxu0 %v1282
    %1381 = vmatpush.bf16.msra.mxu0 %v1274
    %1382 = vmatpush.bf16.msra.mxu0 %v1266
    %1383 = vmatpush.bf16.msra.mxu0 %v1258
    %1384 = vmatpush.bf16.msra.mxu0 %v1250
    %1385 = vmatpush.bf16.msra.mxu0 %v1242
    %1386 = vmatpush.bf16.msra.mxu0 %v1234
    %1387 = vmatpush.bf16.msra.mxu0 %v1226
    %1388 = vmatmul.bf16.gmra.mxu0 %v949
    %v1389 = vpop.f32.mrf.mxu0
    %v1390 = vadd.f32 %v1018, %v1389
    %v1391 = vpop.f32.mrf.mxu0
    %v1392 = vadd.f32 %v1018, %v1391
    %1393 = vdwg.mxu0
    %1394 = vmatpush.bf16.msra.mxu0 %v1283
    %1395 = vmatpush.bf16.msra.mxu0 %v1275
    %1396 = vmatpush.bf16.msra.mxu0 %v1267
    %1397 = vmatpush.bf16.msra.mxu0 %v1259
    %1398 = vmatpush.bf16.msra.mxu0 %v1251
    %1399 = vmatpush.bf16.msra.mxu0 %v1243
    %1400 = vmatpush.bf16.msra.mxu0 %v1235
    %1401 = vmatpush.bf16.msra.mxu0 %v1227
    %1402 = vmatmul.bf16.gmra.mxu0 %v949
    %v1403 = vpop.f32.mrf.mxu0
    %v1404 = vadd.f32 %v1019, %v1403
    %v1405 = vpop.f32.mrf.mxu0
    %v1406 = vadd.f32 %v1019, %v1405
    %1407 = vdwg.mxu0
    %1408 = vmatpush.bf16.msra.mxu0 %v1284
    %1409 = vmatpush.bf16.msra.mxu0 %v1276
    %1410 = vmatpush.bf16.msra.mxu0 %v1268
    %1411 = vmatpush.bf16.msra.mxu0 %v1260
    %1412 = vmatpush.bf16.msra.mxu0 %v1252
    %1413 = vmatpush.bf16.msra.mxu0 %v1244
    %1414 = vmatpush.bf16.msra.mxu0 %v1236
    %1415 = vmatpush.bf16.msra.mxu0 %v1228
    %1416 = vmatmul.bf16.gmra.mxu0 %v949
    %v1417 = vpop.f32.mrf.mxu0
    %v1418 = vadd.f32 %v1020, %v1417
    %v1419 = vpop.f32.mrf.mxu0
    %v1420 = vadd.f32 %v1020, %v1419
    %1421 = vdwg.mxu0
    %1422 = vmatpush.bf16.msra.mxu0 %v1285
    %1423 = vmatpush.bf16.msra.mxu0 %v1277
    %1424 = vmatpush.bf16.msra.mxu0 %v1269
    %1425 = vmatpush.bf16.msra.mxu0 %v1261
    %1426 = vmatpush.bf16.msra.mxu0 %v1253
    %1427 = vmatpush.bf16.msra.mxu0 %v1245
    %1428 = vmatpush.bf16.msra.mxu0 %v1237
    %1429 = vmatpush.bf16.msra.mxu0 %v1229
    %1430 = vmatmul.bf16.gmra.mxu0 %v949
    %v1431 = vpop.f32.mrf.mxu0
    %v1432 = vadd.f32 %v1021, %v1431
    %v1433 = vpop.f32.mrf.mxu0
    %v1434 = vadd.f32 %v1021, %v1433
    %1435 = vdwg.mxu0
    %1436 = vmatpush.bf16.msra.mxu0 %v1286
    %1437 = vmatpush.bf16.msra.mxu0 %v1278
    %1438 = vmatpush.bf16.msra.mxu0 %v1270
    %1439 = vmatpush.bf16.msra.mxu0 %v1262
    %1440 = vmatpush.bf16.msra.mxu0 %v1254
    %1441 = vmatpush.bf16.msra.mxu0 %v1246
    %1442 = vmatpush.bf16.msra.mxu0 %v1238
    %1443 = vmatpush.bf16.msra.mxu0 %v1230
    %1444 = vmatmul.bf16.gmra.mxu0 %v949
    %v1445 = vpop.f32.mrf.mxu0
    %v1446 = vadd.f32 %v1022, %v1445
    %v1447 = vpop.f32.mrf.mxu0
    %v1448 = vadd.f32 %v1022, %v1447
    %1449 = vdwg.mxu0
    %1450 = vmatpush.bf16.msra.mxu0 %v1287
    %1451 = vmatpush.bf16.msra.mxu0 %v1279
    %1452 = vmatpush.bf16.msra.mxu0 %v1271
    %1453 = vmatpush.bf16.msra.mxu0 %v1263
    %1454 = vmatpush.bf16.msra.mxu0 %v1255
    %1455 = vmatpush.bf16.msra.mxu0 %v1247
    %1456 = vmatpush.bf16.msra.mxu0 %v1239
    %1457 = vmatpush.bf16.msra.mxu0 %v1231
    %1458 = vmatmul.bf16.gmra.mxu0 %v949
    %v1459 = vpop.f32.mrf.mxu0
    %v1460 = vadd.f32 %v1023, %v1459
    %v1461 = vpop.f32.mrf.mxu0
    %v1462 = vadd.f32 %v1023, %v1461
    %1463 = vdwg.mxu0
    %v1464 = vmul.f32 %v1362, 0.5
    %v1465 = vmul.f32 %v1376, 0.5
    %v1466 = vmul.f32 %v1390, 0.5
    %v1467 = vmul.f32 %v1404, 0.5
    %v1468 = vmul.f32 %v1418, 0.5
    %v1469 = vmul.f32 %v1432, 0.5
    %v1470 = vmul.f32 %v1446, 0.5
    %v1471 = vmul.f32 %v1460, 0.5
    %v1472 = vmul.f32 %v1364, 0.5
    %v1473 = vmul.f32 %v1378, 0.5
    %v1474 = vmul.f32 %v1392, 0.5
    %v1475 = vmul.f32 %v1406, 0.5
    %v1476 = vmul.f32 %v1420, 0.5
    %v1477 = vmul.f32 %v1434, 0.5
    %v1478 = vmul.f32 %v1448, 0.5
    %v1479 = vmul.f32 %v1462, 0.5
    %v1480 = vtanh.pop %v1464
    %v1481 = vtanh.pop %v1465
    %v1482 = vtanh.pop %v1466
    %v1483 = vtanh.pop %v1467
    %v1484 = vtanh.pop %v1468
    %v1485 = vtanh.pop %v1469
    %v1486 = vtanh.pop %v1470
    %v1487 = vtanh.pop %v1471
    %v1488 = vtanh.pop %v1472
    %v1489 = vtanh.pop %v1473
    %v1490 = vtanh.pop %v1474
    %v1491 = vtanh.pop %v1475
    %v1492 = vtanh.pop %v1476
    %v1493 = vtanh.pop %v1477
    %v1494 = vtanh.pop %v1478
    %v1495 = vtanh.pop %v1479
    %v1496 = vmul.f32 %v1480, 0.5
    %v1497 = vmul.f32 %v1481, 0.5
    %v1498 = vmul.f32 %v1482, 0.5
    %v1499 = vmul.f32 %v1483, 0.5
    %v1500 = vmul.f32 %v1484, 0.5
    %v1501 = vmul.f32 %v1485, 0.5
    %v1502 = vmul.f32 %v1486, 0.5
    %v1503 = vmul.f32 %v1487, 0.5
    %v1504 = vmul.f32 %v1488, 0.5
    %v1505 = vmul.f32 %v1489, 0.5
    %v1506 = vmul.f32 %v1490, 0.5
    %v1507 = vmul.f32 %v1491, 0.5
    %v1508 = vmul.f32 %v1492, 0.5
    %v1509 = vmul.f32 %v1493, 0.5
    %v1510 = vmul.f32 %v1494, 0.5
    %v1511 = vmul.f32 %v1495, 0.5
    %v1512 = vadd.f32 %v1496, 0.5
    %v1513 = vadd.f32 %v1497, 0.5
    %v1514 = vadd.f32 %v1498, 0.5
    %v1515 = vadd.f32 %v1499, 0.5
    %v1516 = vadd.f32 %v1500, 0.5
    %v1517 = vadd.f32 %v1501, 0.5
    %v1518 = vadd.f32 %v1502, 0.5
    %v1519 = vadd.f32 %v1503, 0.5
    %v1520 = vadd.f32 %v1504, 0.5
    %v1521 = vadd.f32 %v1505, 0.5
    %v1522 = vadd.f32 %v1506, 0.5
    %v1523 = vadd.f32 %v1507, 0.5
    %v1524 = vadd.f32 %v1508, 0.5
    %v1525 = vadd.f32 %v1509, 0.5
    %v1526 = vadd.f32 %v1510, 0.5
    %v1527 = vadd.f32 %v1511, 0.5
    %1528 = vst [vmem:[#allocation13] sm:$0xff] %v1512
    %1529 = vst [vmem:[#allocation13 + $0x8] sm:$0xff] %v1513
    %1530 = vst [vmem:[#allocation13 + $0x10] sm:$0xff] %v1514
    %1531 = vst [vmem:[#allocation13 + $0x18] sm:$0xff] %v1515
    %1532 = vst [vmem:[#allocation13 + $0x20] sm:$0xff] %v1516
    %1533 = vst [vmem:[#allocation13 + $0x28] sm:$0xff] %v1517
    %1534 = vst [vmem:[#allocation13 + $0x30] sm:$0xff] %v1518
    %1535 = vst [vmem:[#allocation13 + $0x38] sm:$0xff] %v1519
    %1536 = vst [vmem:[#allocation13 + $0x40] sm:$0xff] %v1520
    %1537 = vst [vmem:[#allocation13 + $0x48] sm:$0xff] %v1521
    %1538 = vst [vmem:[#allocation13 + $0x50] sm:$0xff] %v1522
    %1539 = vst [vmem:[#allocation13 + $0x58] sm:$0xff] %v1523
    %1540 = vst [vmem:[#allocation13 + $0x60] sm:$0xff] %v1524
    %1541 = vst [vmem:[#allocation13 + $0x68] sm:$0xff] %v1525
    %1542 = vst [vmem:[#allocation13 + $0x70] sm:$0xff] %v1526
    %1543 = vst [vmem:[#allocation13 + $0x78] sm:$0xff] %v1527
    // Predicated region
    $region62: #{tpu_custom_call.1} parent=1 // pred_check
      _
    $region63: #{tpu_custom_call.1} parent=1 // pred_check_branch
      %1545 = sbr.rel (0) target = $region65
    $region64: #{tpu_custom_call.1} parent=1 // pred_region
      %1547 = vsyncadd [#allocation4], 0
      %s1548 = sshll.u32 [#allocation13], 4
      %s1549 = int_to_ptr.vmem [resolvable:$true] %s1548
      %s1550 = sshll.u32 %s9, 4
      %s1551 = int_to_ptr.hbm [resolvable:$true] %s1550
      %1556 = dma.vmem_to_hbm [thread:$0]  %s1549, 2048, %s1551, [#allocation4], 1024, 1024, 64
    $region65: #{tpu_custom_call.1} parent=1 // pred_fallthru
      _
    // Predicated region
    $region66: #{tpu_custom_call.1} parent=1 // pred_check
      _
    $region67: #{tpu_custom_call.1} parent=1 // pred_check_branch
      %1558 = sbr.rel (0) target = $region69
    $region68: #{tpu_custom_call.1} parent=1 // pred_region
      %1560 = dma.done [#allocation4], 2048
    $region69: #{tpu_custom_call.1} parent=1 // pred_fallthru
      _
    %1561 = vsyncpa [#allocation3], 1
    %1562 = vsyncpa [#allocation6], 1
    %1563 = vsyncpa [#allocation9], 1
    %1564 = vsyncpa [#allocation12], 1
    %1565 = vsyncpa [#allocation4], 1

// kernel: tpu_custom_call.1
$region0: #{tpu_custom_call.1}
  #allocation0 [shape = 'u32[]', space=smem, size = 0x4, offset = 0x4, fixed_abs, tag = 'smem constant byte address 0x4 - core index']
  #allocation1 [shape = 'u32[72,128]{1,0:T(1,128)}', space=vmem, size = 0x9000, scoped, tag = 'internal scratch']
  %s0 = inlined_call_operand.hbm [shape: f32[16,1024], index: 0, kind: input, shape index: {}]
  %s1 = inlined_call_operand.hbm [shape: bf16[1024,128], index: 1, kind: input, shape index: {}]
  %s2 = inlined_call_operand.vmem [shape: f32[1,128], index: 2, kind: input, shape index: {}]
  %s3 = inlined_call_operand.hbm [shape: bf16[128,128], index: 3, kind: input, shape index: {}]
  %s4 = inlined_call_operand.vmem [shape: f32[1,128], index: 4, kind: input, shape index: {}]
  %s5 = inlined_call_operand.hbm [shape: bf16[128,128], index: 5, kind: input, shape index: {}]
  %s6 = inlined_call_operand.vmem [shape: f32[1,128], index: 6, kind: input, shape index: {}]
  %s7 = inlined_call_operand.hbm [shape: bf16[128,1024], index: 7, kind: input, shape index: {}]
  %s8 = inlined_call_operand.hbm [shape: f32[1,1024], index: 8, kind: input, shape index: {}]
  %s9 = inlined_call_operand.hbm [shape: f32[16,1024], index: 9, kind: output, shape index: {}]
  %s10 = sld [smem:[#allocation0]]
  $region70: #{tpu_custom_call.1} parent=0
    _
  %s12 = ssub.s32 1, %s10
  %s13 = scalar_select 0, %s12, %s10
  $region1: #{tpu_custom_call.1} parent=0
    #allocation2 [shape = 'u8[65536]{0}', space=vmem, size = 0x10000, scoped, tag = 'input window, operand 0, single buffered']
    #allocation3 [shape = 's32[1]{0}', space=sflag, size = 0x4, scoped, tag = 'scoped memory for tpu_custom_call.1']
    #allocation4 [shape = 's32[1]{0}', space=sflag, size = 0x4, scoped, tag = 'scoped memory for tpu_custom_call.1']
    #allocation5 [shape = 'u8[262144]{0}', space=vmem, size = 0x40000, scoped, tag = 'input window, operand 1, single buffered']
    #allocation6 [shape = 's32[1]{0}', space=sflag, size = 0x4, scoped, tag = 'scoped memory for tpu_custom_call.1']
    #allocation7 [shape = 'u8[32768]{0}', space=vmem, size = 0x8000, scoped, tag = 'input window, operand 3, single buffered']
    #allocation8 [shape = 'u8[32768]{0}', space=vmem, size = 0x8000, scoped, tag = 'input window, operand 5, single buffered']
    #allocation9 [shape = 's32[1]{0}', space=sflag, size = 0x4, scoped, tag = 'scoped memory for tpu_custom_call.1']
    #allocation10 [shape = 'u8[262144]{0}', space=vmem, size = 0x40000, scoped, tag = 'input window, operand 7, single buffered']
    #allocation11 [shape = 'u8[4096]{0}', space=vmem, size = 0x1000, scoped, tag = 'input window, operand 8, single buffered']
    #allocation12 [shape = 's32[1]{0}', space=sflag, size = 0x4, scoped, tag = 'scoped memory for tpu_custom_call.1']
    #allocation13 [shape = 'u8[65536]{0}', space=vmem, size = 0x10000, scoped, tag = 'output window, operand 0, single buffered']
    %14 = vsyncpa [#allocation3], 0
    %15 = vsyncpa [#allocation6], 0
    %16 = vsyncpa [#allocation9], 0
    %17 = vsyncpa [#allocation12], 0
    %18 = vsyncpa [#allocation4], 0
    // Predicated region
    $region2: #{tpu_custom_call.1} parent=1 // pred_check
      _
    $region3: #{tpu_custom_call.1} parent=1 // pred_check_branch
      %20 = sbr.rel (0) target = $region5
    $region4: #{tpu_custom_call.1} parent=1 // pred_region
      %22 = vsyncadd [#allocation3], 0
      %s23 = sshll.u32 %s0, 4
      %s24 = int_to_ptr.hbm [resolvable:$true] %s23
      %s25 = sshll.u32 [#allocation2], 4
      %s26 = int_to_ptr.vmem [resolvable:$true] %s25
      %31 = dma.hbm_to_vmem [thread:$0]  %s24, 2048, %s26, [#allocation3], 1024, 1024, 64
    $region5: #{tpu_custom_call.1} parent=1 // pred_fallthru
      _
    // Predicated region
    $region6: #{tpu_custom_call.1} parent=1 // pred_check
      _
    $region7: #{tpu_custom_call.1} parent=1 // pred_check_branch
      %33 = sbr.rel (0) target = $region9
    $region8: #{tpu_custom_call.1} parent=1 // pred_region
      %35 = vsyncadd [#allocation6], 0
      %s36 = sshll.u32 %s1, 4
      %s37 = int_to_ptr.hbm [resolvable:$true] %s36
      %s38 = sshll.u32 [#allocation5], 4
      %s39 = int_to_ptr.vmem [resolvable:$true] %s38
      %44 = dma.hbm_to_vmem [thread:$0]  %s37, 8192, %s39, [#allocation6], 64, 64, 4
    $region9: #{tpu_custom_call.1} parent=1 // pred_fallthru
      _
    // Predicated region
    $region10: #{tpu_custom_call.1} parent=1 // pred_check
      _
    $region11: #{tpu_custom_call.1} parent=1 // pred_check_branch
      %46 = sbr.rel (0) target = $region13
    $region12: #{tpu_custom_call.1} parent=1 // pred_region
      _
    $region13: #{tpu_custom_call.1} parent=1 // pred_fallthru
      _
    // Predicated region
    $region14: #{tpu_custom_call.1} parent=1 // pred_check
      _
    $region15: #{tpu_custom_call.1} parent=1 // pred_check_branch
      %48 = sbr.rel (0) target = $region17
    $region16: #{tpu_custom_call.1} parent=1 // pred_region
      %50 = vsyncadd [#allocation6], 0
      %s51 = sshll.u32 %s3, 4
      %s52 = int_to_ptr.hbm [resolvable:$true] %s51
      %s53 = sshll.u32 [#allocation7], 4
      %s54 = int_to_ptr.vmem [resolvable:$true] %s53
      %59 = dma.hbm_to_vmem [thread:$0]  %s52, 1024, %s54, [#allocation6], 64, 64, 4
    $region17: #{tpu_custom_call.1} parent=1 // pred_fallthru
      _
    // Predicated region
    $region18: #{tpu_custom_call.1} parent=1 // pred_check
      _
    $region19: #{tpu_custom_call.1} parent=1 // pred_check_branch
      %61 = sbr.rel (0) target = $region21
    $region20: #{tpu_custom_call.1} parent=1 // pred_region
      _
    $region21: #{tpu_custom_call.1} parent=1 // pred_fallthru
      _
    // Predicated region
    $region22: #{tpu_custom_call.1} parent=1 // pred_check
      _
    $region23: #{tpu_custom_call.1} parent=1 // pred_check_branch
      %63 = sbr.rel (0) target = $region25
    $region24: #{tpu_custom_call.1} parent=1 // pred_region
      %65 = vsyncadd [#allocation9], 0
      %s66 = sshll.u32 %s5, 4
      %s67 = int_to_ptr.hbm [resolvable:$true] %s66
      %s68 = sshll.u32 [#allocation8], 4
      %s69 = int_to_ptr.vmem [resolvable:$true] %s68
      %74 = dma.hbm_to_vmem [thread:$0]  %s67, 1024, %s69, [#allocation9], 64, 64, 4
    $region25: #{tpu_custom_call.1} parent=1 // pred_fallthru
      _
    // Predicated region
    $region26: #{tpu_custom_call.1} parent=1 // pred_check
      _
    $region27: #{tpu_custom_call.1} parent=1 // pred_check_branch
      %76 = sbr.rel (0) target = $region29
    $region28: #{tpu_custom_call.1} parent=1 // pred_region
      _
    $region29: #{tpu_custom_call.1} parent=1 // pred_fallthru
      _
    // Predicated region
    $region30: #{tpu_custom_call.1} parent=1 // pred_check
      _
    $region31: #{tpu_custom_call.1} parent=1 // pred_check_branch
      %78 = sbr.rel (0) target = $region33
    $region32: #{tpu_custom_call.1} parent=1 // pred_region
      %80 = vsyncadd [#allocation9], 0
      %s81 = sshll.u32 %s7, 4
      %s82 = int_to_ptr.hbm [resolvable:$true] %s81
      %s83 = sshll.u32 [#allocation10], 4
      %s84 = int_to_ptr.vmem [resolvable:$true] %s83
      %89 = dma.hbm_to_vmem [thread:$0]  %s82, 8192, %s84, [#allocation9], 512, 512, 32
    $region33: #{tpu_custom_call.1} parent=1 // pred_fallthru
      _
    // Predicated region
    $region34: #{tpu_custom_call.1} parent=1 // pred_check
      _
    $region35: #{tpu_custom_call.1} parent=1 // pred_check_branch
      %91 = sbr.rel (0) target = $region37
    $region36: #{tpu_custom_call.1} parent=1 // pred_region
      %93 = vsyncadd [#allocation12], 0
      %s95 = sshll.u32 %s8, 4
      %s96 = int_to_ptr.hbm [resolvable:$true] %s95
      %s97 = sshll.u32 [#allocation11], 4
      %s98 = int_to_ptr.vmem [resolvable:$true] %s97
      %100 = dma.hbm_to_vmem [thread:$0]  %s96, 128, %s98, [#allocation12]
    $region37: #{tpu_custom_call.1} parent=1 // pred_fallthru
      _
    // Predicated region
    $region38: #{tpu_custom_call.1} parent=1 // pred_check
      _
    $region39: #{tpu_custom_call.1} parent=1 // pred_check_branch
      %102 = sbr.rel (0) target = $region41
    $region40: #{tpu_custom_call.1} parent=1 // pred_region
      %104 = dma.done [#allocation3], 2048
    $region41: #{tpu_custom_call.1} parent=1 // pred_fallthru
      _
    // Predicated region
    $region42: #{tpu_custom_call.1} parent=1 // pred_check
      _
    $region43: #{tpu_custom_call.1} parent=1 // pred_check_branch
      %106 = sbr.rel (0) target = $region45
    $region44: #{tpu_custom_call.1} parent=1 // pred_region
      %108 = dma.done [#allocation6], 8192
    $region45: #{tpu_custom_call.1} parent=1 // pred_fallthru
      _
    // Predicated region
    $region46: #{tpu_custom_call.1} parent=1 // pred_check
      _
    $region47: #{tpu_custom_call.1} parent=1 // pred_check_branch
      %110 = sbr.rel (0) target = $region49
    $region48: #{tpu_custom_call.1} parent=1 // pred_region
      %112 = dma.done [#allocation6], 1024
    $region49: #{tpu_custom_call.1} parent=1 // pred_fallthru
      _
    // Predicated region
    $region50: #{tpu_custom_call.1} parent=1 // pred_check
      _
    $region51: #{tpu_custom_call.1} parent=1 // pred_check_branch
      %114 = sbr.rel (0) target = $region53
    $region52: #{tpu_custom_call.1} parent=1 // pred_region
      %116 = dma.done [#allocation9], 1024
    $region53: #{tpu_custom_call.1} parent=1 // pred_fallthru
      _
    // Predicated region
    $region54: #{tpu_custom_call.1} parent=1 // pred_check
      _
    $region55: #{tpu_custom_call.1} parent=1 // pred_check_branch
      %118 = sbr.rel (0) target = $region57
    $region56: #{tpu_custom_call.1} parent=1 // pred_region
      %120 = dma.done [#allocation9], 8192
    $region57: #{tpu_custom_call.1} parent=1 // pred_fallthru
      _
    // Predicated region
    $region58: #{tpu_custom_call.1} parent=1 // pred_check
      _
    $region59: #{tpu_custom_call.1} parent=1 // pred_check_branch
      %122 = sbr.rel (0) target = $region61
    $region60: #{tpu_custom_call.1} parent=1 // pred_region
      %124 = dma.done [#allocation12], 128
    $region61: #{tpu_custom_call.1} parent=1 // pred_fallthru
      _
    %v125 = vld [vmem:[#allocation2] sm:$0xff]
    %v126 = vld [vmem:[#allocation2 + $0x8] sm:$0xff]
    %v127 = vld [vmem:[#allocation2 + $0x10] sm:$0xff]
    %v128 = vld [vmem:[#allocation2 + $0x18] sm:$0xff]
    %v129 = vld [vmem:[#allocation2 + $0x20] sm:$0xff]
    %v130 = vld [vmem:[#allocation2 + $0x28] sm:$0xff]
    %v131 = vld [vmem:[#allocation2 + $0x30] sm:$0xff]
    %v132 = vld [vmem:[#allocation2 + $0x38] sm:$0xff]
    %v133 = vld [vmem:[#allocation2 + $0x40] sm:$0xff]
    %v134 = vld [vmem:[#allocation2 + $0x48] sm:$0xff]
    %v135 = vld [vmem:[#allocation2 + $0x50] sm:$0xff]
    %v136 = vld [vmem:[#allocation2 + $0x58] sm:$0xff]
    %v137 = vld [vmem:[#allocation2 + $0x60] sm:$0xff]
    %v138 = vld [vmem:[#allocation2 + $0x68] sm:$0xff]
    %v139 = vld [vmem:[#allocation2 + $0x70] sm:$0xff]
    %v140 = vld [vmem:[#allocation2 + $0x78] sm:$0xff]
    %v141 = vpack.c.bf16 %v133, %v125
    %v142 = vpack.c.bf16 %v134, %v126
    %v143 = vpack.c.bf16 %v135, %v127
    %v144 = vpack.c.bf16 %v136, %v128
    %v145 = vpack.c.bf16 %v137, %v129
    %v146 = vpack.c.bf16 %v138, %v130
    %v147 = vpack.c.bf16 %v139, %v131
    %v148 = vpack.c.bf16 %v140, %v132
    %v149 = vld [vmem:[#allocation5] sm:$0xf]
    %v150 = vld [vmem:[#allocation5 + $0x4] sm:$0xf]
    %v151 = vld [vmem:[#allocation5 + $0x8] sm:$0xf]
    %v152 = vld [vmem:[#allocation5 + $0xc] sm:$0xf]
    %v153 = vld [vmem:[#allocation5 + $0x10] sm:$0xf]
    %v154 = vld [vmem:[#allocation5 + $0x14] sm:$0xf]
    %v155 = vld [vmem:[#allocation5 + $0x18] sm:$0xf]
    %v156 = vld [vmem:[#allocation5 + $0x1c] sm:$0xf]
    %v157 = vld [vmem:[#allocation5 + $0x20] sm:$0xf]
    %v158 = vld [vmem:[#allocation5 + $0x24] sm:$0xf]
    %v159 = vld [vmem:[#allocation5 + $0x28] sm:$0xf]
    %v160 = vld [vmem:[#allocation5 + $0x2c] sm:$0xf]
    %v161 = vld [vmem:[#allocation5 + $0x30] sm:$0xf]
    %v162 = vld [vmem:[#allocation5 + $0x34] sm:$0xf]
    %v163 = vld [vmem:[#allocation5 + $0x38] sm:$0xf]
    %v164 = vld [vmem:[#allocation5 + $0x3c] sm:$0xf]
    %v165 = vld [vmem:[#allocation5 + $0x40] sm:$0xf]
    %v166 = vld [vmem:[#allocation5 + $0x44] sm:$0xf]
    %v167 = vld [vmem:[#allocation5 + $0x48] sm:$0xf]
    %v168 = vld [vmem:[#allocation5 + $0x4c] sm:$0xf]
    %v169 = vld [vmem:[#allocation5 + $0x50] sm:$0xf]
    %v170 = vld [vmem:[#allocation5 + $0x54] sm:$0xf]
    %v171 = vld [vmem:[#allocation5 + $0x58] sm:$0xf]
    %v172 = vld [vmem:[#allocation5 + $0x5c] sm:$0xf]
    %v173 = vld [vmem:[#allocation5 + $0x60] sm:$0xf]
    %v174 = vld [vmem:[#allocation5 + $0x64] sm:$0xf]
    %v175 = vld [vmem:[#allocation5 + $0x68] sm:$0xf]
    %v176 = vld [vmem:[#allocation5 + $0x6c] sm:$0xf]
    %v177 = vld [vmem:[#allocation5 + $0x70] sm:$0xf]
    %v178 = vld [vmem:[#allocation5 + $0x74] sm:$0xf]
    %v179 = vld [vmem:[#allocation5 + $0x78] sm:$0xf]
    %v180 = vld [vmem:[#allocation5 + $0x7c] sm:$0xf]
    %v181 = vld [vmem:[#allocation5 + $0x80] sm:$0xf]
    %v182 = vld [vmem:[#allocation5 + $0x84] sm:$0xf]
    %v183 = vld [vmem:[#allocation5 + $0x88] sm:$0xf]
    %v184 = vld [vmem:[#allocation5 + $0x8c] sm:$0xf]
    %v185 = vld [vmem:[#allocation5 + $0x90] sm:$0xf]
    %v186 = vld [vmem:[#allocation5 + $0x94] sm:$0xf]
    %v187 = vld [vmem:[#allocation5 + $0x98] sm:$0xf]
    %v188 = vld [vmem:[#allocation5 + $0x9c] sm:$0xf]
    %v189 = vld [vmem:[#allocation5 + $0xa0] sm:$0xf]
    %v190 = vld [vmem:[#allocation5 + $0xa4] sm:$0xf]
    %v191 = vld [vmem:[#allocation5 + $0xa8] sm:$0xf]
    %v192 = vld [vmem:[#allocation5 + $0xac] sm:$0xf]
    %v193 = vld [vmem:[#allocation5 + $0xb0] sm:$0xf]
    %v194 = vld [vmem:[#allocation5 + $0xb4] sm:$0xf]
    %v195 = vld [vmem:[#allocation5 + $0xb8] sm:$0xf]
    %v196 = vld [vmem:[#allocation5 + $0xbc] sm:$0xf]
    %v197 = vld [vmem:[#allocation5 + $0xc0] sm:$0xf]
    %v198 = vld [vmem:[#allocation5 + $0xc4] sm:$0xf]
    %v199 = vld [vmem:[#allocation5 + $0xc8] sm:$0xf]
    %v200 = vld [vmem:[#allocation5 + $0xcc] sm:$0xf]
    %v201 = vld [vmem:[#allocation5 + $0xd0] sm:$0xf]
    %v202 = vld [vmem:[#allocation5 + $0xd4] sm:$0xf]
    %v203 = vld [vmem:[#allocation5 + $0xd8] sm:$0xf]
    %v204 = vld [vmem:[#allocation5 + $0xdc] sm:$0xf]
    %v205 = vld [vmem:[#allocation5 + $0xe0] sm:$0xf]
    %v206 = vld [vmem:[#allocation5 + $0xe4] sm:$0xf]
    %v207 = vld [vmem:[#allocation5 + $0xe8] sm:$0xf]
    %v208 = vld [vmem:[#allocation5 + $0xec] sm:$0xf]
    %v209 = vld [vmem:[#allocation5 + $0xf0] sm:$0xf]
    %v210 = vld [vmem:[#allocation5 + $0xf4] sm:$0xf]
    %v211 = vld [vmem:[#allocation5 + $0xf8] sm:$0xf]
    %v212 = vld [vmem:[#allocation5 + $0xfc] sm:$0xf]
    %v213 = vld [vmem:[#allocation5 + $0x100] sm:$0xf]
    %v214 = vld [vmem:[#allocation5 + $0x104] sm:$0xf]
    %v215 = vld [vmem:[#allocation5 + $0x108] sm:$0xf]
    %v216 = vld [vmem:[#allocation5 + $0x10c] sm:$0xf]
    %v217 = vld [vmem:[#allocation5 + $0x110] sm:$0xf]
    %v218 = vld [vmem:[#allocation5 + $0x114] sm:$0xf]
    %v219 = vld [vmem:[#allocation5 + $0x118] sm:$0xf]
    %v220 = vld [vmem:[#allocation5 + $0x11c] sm:$0xf]
    %v221 = vld [vmem:[#allocation5 + $0x120] sm:$0xf]
    %v222 = vld [vmem:[#allocation5 + $0x124] sm:$0xf]
    %v223 = vld [vmem:[#allocation5 + $0x128] sm:$0xf]
    %v224 = vld [vmem:[#allocation5 + $0x12c] sm:$0xf]
    %v225 = vld [vmem:[#allocation5 + $0x130] sm:$0xf]
    %v226 = vld [vmem:[#allocation5 + $0x134] sm:$0xf]
    %v227 = vld [vmem:[#allocation5 + $0x138] sm:$0xf]
    %v228 = vld [vmem:[#allocation5 + $0x13c] sm:$0xf]
    %v229 = vld [vmem:[#allocation5 + $0x140] sm:$0xf]
    %v230 = vld [vmem:[#allocation5 + $0x144] sm:$0xf]
    %v231 = vld [vmem:[#allocation5 + $0x148] sm:$0xf]
    %v232 = vld [vmem:[#allocation5 + $0x14c] sm:$0xf]
    %v233 = vld [vmem:[#allocation5 + $0x150] sm:$0xf]
    %v234 = vld [vmem:[#allocation5 + $0x154] sm:$0xf]
    %v235 = vld [vmem:[#allocation5 + $0x158] sm:$0xf]
    %v236 = vld [vmem:[#allocation5 + $0x15c] sm:$0xf]
    %v237 = vld [vmem:[#allocation5 + $0x160] sm:$0xf]
    %v238 = vld [vmem:[#allocation5 + $0x164] sm:$0xf]
    %v239 = vld [vmem:[#allocation5 + $0x168] sm:$0xf]
    %v240 = vld [vmem:[#allocation5 + $0x16c] sm:$0xf]
    %v241 = vld [vmem:[#allocation5 + $0x170] sm:$0xf]
    %v242 = vld [vmem:[#allocation5 + $0x174] sm:$0xf]
    %v243 = vld [vmem:[#allocation5 + $0x178] sm:$0xf]
    %v244 = vld [vmem:[#allocation5 + $0x17c] sm:$0xf]
    %v245 = vld [vmem:[#allocation5 + $0x180] sm:$0xf]
    %v246 = vld [vmem:[#allocation5 + $0x184] sm:$0xf]
    %v247 = vld [vmem:[#allocation5 + $0x188] sm:$0xf]
    %v248 = vld [vmem:[#allocation5 + $0x18c] sm:$0xf]
    %v249 = vld [vmem:[#allocation5 + $0x190] sm:$0xf]
    %v250 = vld [vmem:[#allocation5 + $0x194] sm:$0xf]
    %v251 = vld [vmem:[#allocation5 + $0x198] sm:$0xf]
    %v252 = vld [vmem:[#allocation5 + $0x19c] sm:$0xf]
    %v253 = vld [vmem:[#allocation5 + $0x1a0] sm:$0xf]
    %v254 = vld [vmem:[#allocation5 + $0x1a4] sm:$0xf]
    %v255 = vld [vmem:[#allocation5 + $0x1a8] sm:$0xf]
    %v256 = vld [vmem:[#allocation5 + $0x1ac] sm:$0xf]
    %v257 = vld [vmem:[#allocation5 + $0x1b0] sm:$0xf]
    %v258 = vld [vmem:[#allocation5 + $0x1b4] sm:$0xf]
    %v259 = vld [vmem:[#allocation5 + $0x1b8] sm:$0xf]
    %v260 = vld [vmem:[#allocation5 + $0x1bc] sm:$0xf]
    %v261 = vld [vmem:[#allocation5 + $0x1c0] sm:$0xf]
    %v262 = vld [vmem:[#allocation5 + $0x1c4] sm:$0xf]
    %v263 = vld [vmem:[#allocation5 + $0x1c8] sm:$0xf]
    %v264 = vld [vmem:[#allocation5 + $0x1cc] sm:$0xf]
    %v265 = vld [vmem:[#allocation5 + $0x1d0] sm:$0xf]
    %v266 = vld [vmem:[#allocation5 + $0x1d4] sm:$0xf]
    %v267 = vld [vmem:[#allocation5 + $0x1d8] sm:$0xf]
    %v268 = vld [vmem:[#allocation5 + $0x1dc] sm:$0xf]
    %v269 = vld [vmem:[#allocation5 + $0x1e0] sm:$0xf]
    %v270 = vld [vmem:[#allocation5 + $0x1e4] sm:$0xf]
    %v271 = vld [vmem:[#allocation5 + $0x1e8] sm:$0xf]
    %v272 = vld [vmem:[#allocation5 + $0x1ec] sm:$0xf]
    %v273 = vld [vmem:[#allocation5 + $0x1f0] sm:$0xf]
    %v274 = vld [vmem:[#allocation5 + $0x1f4] sm:$0xf]
    %v275 = vld [vmem:[#allocation5 + $0x1f8] sm:$0xf]
    %v276 = vld [vmem:[#allocation5 + $0x1fc] sm:$0xf]
    %v277 = vld [vmem:[%s2] sm:$0x1]
    %v279 = vperm.slane %v277, 0
    %v409 = vunpack.c.l.b16 %v149
    %v410 = vunpack.c.l.b16 %v150
    %v411 = vunpack.c.l.b16 %v151
    %v412 = vunpack.c.l.b16 %v152
    %v413 = vunpack.c.l.b16 %v153
    %v414 = vunpack.c.l.b16 %v154
    %v415 = vunpack.c.l.b16 %v155
    %v416 = vunpack.c.l.b16 %v156
    %v417 = vunpack.c.l.b16 %v157
    %v418 = vunpack.c.l.b16 %v158
    %v419 = vunpack.c.l.b16 %v159
    %v420 = vunpack.c.l.b16 %v160
    %v421 = vunpack.c.l.b16 %v161
    %v422 = vunpack.c.l.b16 %v162
    %v423 = vunpack.c.l.b16 %v163
    %v424 = vunpack.c.l.b16 %v164
    %v425 = vunpack.c.l.b16 %v165
    %v426 = vunpack.c.l.b16 %v166
    %v427 = vunpack.c.l.b16 %v167
    %v428 = vunpack.c.l.b16 %v168
    %v429 = vunpack.c.l.b16 %v169
    %v430 = vunpack.c.l.b16 %v170
    %v431 = vunpack.c.l.b16 %v171
    %v432 = vunpack.c.l.b16 %v172
    %v433 = vunpack.c.l.b16 %v173
    %v434 = vunpack.c.l.b16 %v174
    %v435 = vunpack.c.l.b16 %v175
    %v436 = vunpack.c.l.b16 %v176
    %v437 = vunpack.c.l.b16 %v177
    %v438 = vunpack.c.l.b16 %v178
    %v439 = vunpack.c.l.b16 %v179
    %v440 = vunpack.c.l.b16 %v180
    %v441 = vunpack.c.l.b16 %v181
    %v442 = vunpack.c.l.b16 %v182
    %v443 = vunpack.c.l.b16 %v183
    %v444 = vunpack.c.l.b16 %v184
    %v445 = vunpack.c.l.b16 %v185
    %v446 = vunpack.c.l.b16 %v186
    %v447 = vunpack.c.l.b16 %v187
    %v448 = vunpack.c.l.b16 %v188
    %v449 = vunpack.c.l.b16 %v189
    %v450 = vunpack.c.l.b16 %v190
    %v451 = vunpack.c.l.b16 %v191
    %v452 = vunpack.c.l.b16 %v192
    %v453 = vunpack.c.l.b16 %v193
    %v454 = vunpack.c.l.b16 %v194
    %v455 = vunpack.c.l.b16 %v195
    %v456 = vunpack.c.l.b16 %v196
    %v457 = vunpack.c.l.b16 %v197
    %v458 = vunpack.c.l.b16 %v198
    %v459 = vunpack.c.l.b16 %v199
    %v460 = vunpack.c.l.b16 %v200
    %v461 = vunpack.c.l.b16 %v201
    %v462 = vunpack.c.l.b16 %v202
    %v463 = vunpack.c.l.b16 %v203
    %v464 = vunpack.c.l.b16 %v204
    %v465 = vunpack.c.l.b16 %v205
    %v466 = vunpack.c.l.b16 %v206
    %v467 = vunpack.c.l.b16 %v207
    %v468 = vunpack.c.l.b16 %v208
    %v469 = vunpack.c.l.b16 %v209
    %v470 = vunpack.c.l.b16 %v210
    %v471 = vunpack.c.l.b16 %v211
    %v472 = vunpack.c.l.b16 %v212
    %v473 = vunpack.c.l.b16 %v213
    %v474 = vunpack.c.l.b16 %v214
    %v475 = vunpack.c.l.b16 %v215
    %v476 = vunpack.c.l.b16 %v216
    %v477 = vunpack.c.l.b16 %v217
    %v478 = vunpack.c.l.b16 %v218
    %v479 = vunpack.c.l.b16 %v219
    %v480 = vunpack.c.l.b16 %v220
    %v481 = vunpack.c.l.b16 %v221
    %v482 = vunpack.c.l.b16 %v222
    %v483 = vunpack.c.l.b16 %v223
    %v484 = vunpack.c.l.b16 %v224
    %v485 = vunpack.c.l.b16 %v225
    %v486 = vunpack.c.l.b16 %v226
    %v487 = vunpack.c.l.b16 %v227
    %v488 = vunpack.c.l.b16 %v228
    %v489 = vunpack.c.l.b16 %v229
    %v490 = vunpack.c.l.b16 %v230
    %v491 = vunpack.c.l.b16 %v231
    %v492 = vunpack.c.l.b16 %v232
    %v493 = vunpack.c.l.b16 %v233
    %v494 = vunpack.c.l.b16 %v234
    %v495 = vunpack.c.l.b16 %v235
    %v496 = vunpack.c.l.b16 %v236
    %v497 = vunpack.c.l.b16 %v237
    %v498 = vunpack.c.l.b16 %v238
    %v499 = vunpack.c.l.b16 %v239
    %v500 = vunpack.c.l.b16 %v240
    %v501 = vunpack.c.l.b16 %v241
    %v502 = vunpack.c.l.b16 %v242
    %v503 = vunpack.c.l.b16 %v243
    %v504 = vunpack.c.l.b16 %v244
    %v505 = vunpack.c.l.b16 %v245
    %v506 = vunpack.c.l.b16 %v246
    %v507 = vunpack.c.l.b16 %v247
    %v508 = vunpack.c.l.b16 %v248
    %v509 = vunpack.c.l.b16 %v249
    %v510 = vunpack.c.l.b16 %v250
    %v511 = vunpack.c.l.b16 %v251
    %v512 = vunpack.c.l.b16 %v252
    %v513 = vunpack.c.l.b16 %v253
    %v514 = vunpack.c.l.b16 %v254
    %v515 = vunpack.c.l.b16 %v255
    %v516 = vunpack.c.l.b16 %v256
    %v517 = vunpack.c.l.b16 %v257
    %v518 = vunpack.c.l.b16 %v258
    %v519 = vunpack.c.l.b16 %v259
    %v520 = vunpack.c.l.b16 %v260
    %v521 = vunpack.c.l.b16 %v261
    %v522 = vunpack.c.l.b16 %v262
    %v523 = vunpack.c.l.b16 %v263
    %v524 = vunpack.c.l.b16 %v264
    %v525 = vunpack.c.l.b16 %v265
    %v526 = vunpack.c.l.b16 %v266
    %v527 = vunpack.c.l.b16 %v267
    %v528 = vunpack.c.l.b16 %v268
    %v529 = vunpack.c.l.b16 %v269
    %v530 = vunpack.c.l.b16 %v270
    %v531 = vunpack.c.l.b16 %v271
    %v532 = vunpack.c.l.b16 %v272
    %v533 = vunpack.c.l.b16 %v273
    %v534 = vunpack.c.l.b16 %v274
    %v535 = vunpack.c.l.b16 %v275
    %v536 = vunpack.c.l.b16 %v276
    %v537 = vpack.c.b16 %v410, %v409
    %v538 = vpack.c.b16 %v412, %v411
    %v539 = vpack.c.b16 %v414, %v413
    %v540 = vpack.c.b16 %v416, %v415
    %v541 = vpack.c.b16 %v418, %v417
    %v542 = vpack.c.b16 %v420, %v419
    %v543 = vpack.c.b16 %v422, %v421
    %v544 = vpack.c.b16 %v424, %v423
    %v545 = vpack.c.b16 %v426, %v425
    %v546 = vpack.c.b16 %v428, %v427
    %v547 = vpack.c.b16 %v430, %v429
    %v548 = vpack.c.b16 %v432, %v431
    %v549 = vpack.c.b16 %v434, %v433
    %v550 = vpack.c.b16 %v436, %v435
    %v551 = vpack.c.b16 %v438, %v437
    %v552 = vpack.c.b16 %v440, %v439
    %v553 = vpack.c.b16 %v442, %v441
    %v554 = vpack.c.b16 %v444, %v443
    %v555 = vpack.c.b16 %v446, %v445
    %v556 = vpack.c.b16 %v448, %v447
    %v557 = vpack.c.b16 %v450, %v449
    %v558 = vpack.c.b16 %v452, %v451
    %v559 = vpack.c.b16 %v454, %v453
    %v560 = vpack.c.b16 %v456, %v455
    %v561 = vpack.c.b16 %v458, %v457
    %v562 = vpack.c.b16 %v460, %v459
    %v563 = vpack.c.b16 %v462, %v461
    %v564 = vpack.c.b16 %v464, %v463
    %v565 = vpack.c.b16 %v466, %v465
    %v566 = vpack.c.b16 %v468, %v467
    %v567 = vpack.c.b16 %v470, %v469
    %v568 = vpack.c.b16 %v472, %v471
    %v569 = vpack.c.b16 %v474, %v473
    %v570 = vpack.c.b16 %v476, %v475
    %v571 = vpack.c.b16 %v478, %v477
    %v572 = vpack.c.b16 %v480, %v479
    %v573 = vpack.c.b16 %v482, %v481
    %v574 = vpack.c.b16 %v484, %v483
    %v575 = vpack.c.b16 %v486, %v485
    %v576 = vpack.c.b16 %v488, %v487
    %v577 = vpack.c.b16 %v490, %v489
    %v578 = vpack.c.b16 %v492, %v491
    %v579 = vpack.c.b16 %v494, %v493
    %v580 = vpack.c.b16 %v496, %v495
    %v581 = vpack.c.b16 %v498, %v497
    %v582 = vpack.c.b16 %v500, %v499
    %v583 = vpack.c.b16 %v502, %v501
    %v584 = vpack.c.b16 %v504, %v503
    %v585 = vpack.c.b16 %v506, %v505
    %v586 = vpack.c.b16 %v508, %v507
    %v587 = vpack.c.b16 %v510, %v509
    %v588 = vpack.c.b16 %v512, %v511
    %v589 = vpack.c.b16 %v514, %v513
    %v590 = vpack.c.b16 %v516, %v515
    %v591 = vpack.c.b16 %v518, %v517
    %v592 = vpack.c.b16 %v520, %v519
    %v593 = vpack.c.b16 %v522, %v521
    %v594 = vpack.c.b16 %v524, %v523
    %v595 = vpack.c.b16 %v526, %v525
    %v596 = vpack.c.b16 %v528, %v527
    %v597 = vpack.c.b16 %v530, %v529
    %v598 = vpack.c.b16 %v532, %v531
    %v599 = vpack.c.b16 %v534, %v533
    %v600 = vpack.c.b16 %v536, %v535
    %665 = vmatpush.bf16.msra.mxu0 %v544
    %666 = vmatpush.bf16.msra.mxu0 %v543
    %667 = vmatpush.bf16.msra.mxu0 %v542
    %668 = vmatpush.bf16.msra.mxu0 %v541
    %669 = vmatpush.bf16.msra.mxu0 %v540
    %670 = vmatpush.bf16.msra.mxu0 %v539
    %671 = vmatpush.bf16.msra.mxu0 %v538
    %672 = vmatpush.bf16.msra.mxu0 %v537
    %673 = vmatmul.bf16.gmra.mxu0 %v141
    %v674 = vpop.f32.mrf.mxu0
    %v675 = vadd.f32 %v279, %v674
    %v676 = vpop.f32.mrf.mxu0
    %v677 = vadd.f32 %v279, %v676
    %678 = vdwg.mxu0
    %679 = vmatpush.bf16.msra.mxu0 %v552
    %680 = vmatpush.bf16.msra.mxu0 %v551
    %681 = vmatpush.bf16.msra.mxu0 %v550
    %682 = vmatpush.bf16.msra.mxu0 %v549
    %683 = vmatpush.bf16.msra.mxu0 %v548
    %684 = vmatpush.bf16.msra.mxu0 %v547
    %685 = vmatpush.bf16.msra.mxu0 %v546
    %686 = vmatpush.bf16.msra.mxu0 %v545
    %687 = vmatmul.bf16.gmra.mxu0 %v142
    %v688 = vpop.f32.mrf.mxu0
    %v689 = vadd.f32 %v675, %v688
    %v690 = vpop.f32.mrf.mxu0
    %v691 = vadd.f32 %v677, %v690
    %692 = vdwg.mxu0
    %693 = vmatpush.bf16.msra.mxu0 %v560
    %694 = vmatpush.bf16.msra.mxu0 %v559
    %695 = vmatpush.bf16.msra.mxu0 %v558
    %696 = vmatpush.bf16.msra.mxu0 %v557
    %697 = vmatpush.bf16.msra.mxu0 %v556
    %698 = vmatpush.bf16.msra.mxu0 %v555
    %699 = vmatpush.bf16.msra.mxu0 %v554
    %700 = vmatpush.bf16.msra.mxu0 %v553
    %701 = vmatmul.bf16.gmra.mxu0 %v143
    %v702 = vpop.f32.mrf.mxu0
    %v703 = vadd.f32 %v689, %v702
    %v704 = vpop.f32.mrf.mxu0
    %v705 = vadd.f32 %v691, %v704
    %706 = vdwg.mxu0
    %707 = vmatpush.bf16.msra.mxu0 %v568
    %708 = vmatpush.bf16.msra.mxu0 %v567
    %709 = vmatpush.bf16.msra.mxu0 %v566
    %710 = vmatpush.bf16.msra.mxu0 %v565
    %711 = vmatpush.bf16.msra.mxu0 %v564
    %712 = vmatpush.bf16.msra.mxu0 %v563
    %713 = vmatpush.bf16.msra.mxu0 %v562
    %714 = vmatpush.bf16.msra.mxu0 %v561
    %715 = vmatmul.bf16.gmra.mxu0 %v144
    %v716 = vpop.f32.mrf.mxu0
    %v717 = vadd.f32 %v703, %v716
    %v718 = vpop.f32.mrf.mxu0
    %v719 = vadd.f32 %v705, %v718
    %720 = vdwg.mxu0
    %721 = vmatpush.bf16.msra.mxu0 %v576
    %722 = vmatpush.bf16.msra.mxu0 %v575
    %723 = vmatpush.bf16.msra.mxu0 %v574
    %724 = vmatpush.bf16.msra.mxu0 %v573
    %725 = vmatpush.bf16.msra.mxu0 %v572
    %726 = vmatpush.bf16.msra.mxu0 %v571
    %727 = vmatpush.bf16.msra.mxu0 %v570
    %728 = vmatpush.bf16.msra.mxu0 %v569
    %729 = vmatmul.bf16.gmra.mxu0 %v145
    %v730 = vpop.f32.mrf.mxu0
    %v731 = vadd.f32 %v717, %v730
    %v732 = vpop.f32.mrf.mxu0
    %v733 = vadd.f32 %v719, %v732
    %734 = vdwg.mxu0
    %735 = vmatpush.bf16.msra.mxu0 %v584
    %736 = vmatpush.bf16.msra.mxu0 %v583
    %737 = vmatpush.bf16.msra.mxu0 %v582
    %738 = vmatpush.bf16.msra.mxu0 %v581
    %739 = vmatpush.bf16.msra.mxu0 %v580
    %740 = vmatpush.bf16.msra.mxu0 %v579
    %741 = vmatpush.bf16.msra.mxu0 %v578
    %742 = vmatpush.bf16.msra.mxu0 %v577
    %743 = vmatmul.bf16.gmra.mxu0 %v146
    %v744 = vpop.f32.mrf.mxu0
    %v745 = vadd.f32 %v731, %v744
    %v746 = vpop.f32.mrf.mxu0
    %v747 = vadd.f32 %v733, %v746
    %748 = vdwg.mxu0
    %749 = vmatpush.bf16.msra.mxu0 %v592
    %750 = vmatpush.bf16.msra.mxu0 %v591
    %751 = vmatpush.bf16.msra.mxu0 %v590
    %752 = vmatpush.bf16.msra.mxu0 %v589
    %753 = vmatpush.bf16.msra.mxu0 %v588
    %754 = vmatpush.bf16.msra.mxu0 %v587
    %755 = vmatpush.bf16.msra.mxu0 %v586
    %756 = vmatpush.bf16.msra.mxu0 %v585
    %757 = vmatmul.bf16.gmra.mxu0 %v147
    %v758 = vpop.f32.mrf.mxu0
    %v759 = vadd.f32 %v745, %v758
    %v760 = vpop.f32.mrf.mxu0
    %v761 = vadd.f32 %v747, %v760
    %762 = vdwg.mxu0
    %763 = vmatpush.bf16.msra.mxu0 %v600
    %764 = vmatpush.bf16.msra.mxu0 %v599
    %765 = vmatpush.bf16.msra.mxu0 %v598
    %766 = vmatpush.bf16.msra.mxu0 %v597
    %767 = vmatpush.bf16.msra.mxu0 %v596
    %768 = vmatpush.bf16.msra.mxu0 %v595
    %769 = vmatpush.bf16.msra.mxu0 %v594
    %770 = vmatpush.bf16.msra.mxu0 %v593
    %771 = vmatmul.bf16.gmra.mxu0 %v148
    %v772 = vpop.f32.mrf.mxu0
    %v773 = vadd.f32 %v759, %v772
    %v774 = vpop.f32.mrf.mxu0
    %v775 = vadd.f32 %v761, %v774
    %776 = vdwg.mxu0
    %v777 = vmax.f32 %v773, 0.0
    %v778 = vmax.f32 %v775, 0.0
    %v779 = vpack.c.bf16 %v778, %v777
    %v780 = vld [vmem:[#allocation7] sm:$0xf]
    %v781 = vld [vmem:[#allocation7 + $0x4] sm:$0xf]
    %v782 = vld [vmem:[#allocation7 + $0x8] sm:$0xf]
    %v783 = vld [vmem:[#allocation7 + $0xc] sm:$0xf]
    %v784 = vld [vmem:[#allocation7 + $0x10] sm:$0xf]
    %v785 = vld [vmem:[#allocation7 + $0x14] sm:$0xf]
    %v786 = vld [vmem:[#allocation7 + $0x18] sm:$0xf]
    %v787 = vld [vmem:[#allocation7 + $0x1c] sm:$0xf]
    %v788 = vld [vmem:[#allocation7 + $0x20] sm:$0xf]
    %v789 = vld [vmem:[#allocation7 + $0x24] sm:$0xf]
    %v790 = vld [vmem:[#allocation7 + $0x28] sm:$0xf]
    %v791 = vld [vmem:[#allocation7 + $0x2c] sm:$0xf]
    %v792 = vld [vmem:[#allocation7 + $0x30] sm:$0xf]
    %v793 = vld [vmem:[#allocation7 + $0x34] sm:$0xf]
    %v794 = vld [vmem:[#allocation7 + $0x38] sm:$0xf]
    %v795 = vld [vmem:[#allocation7 + $0x3c] sm:$0xf]
    %v796 = vld [vmem:[%s4] sm:$0x1]
    %v798 = vperm.slane %v796, 0
    %v816 = vunpack.c.l.b16 %v780
    %v817 = vunpack.c.l.b16 %v781
    %v818 = vunpack.c.l.b16 %v782
    %v819 = vunpack.c.l.b16 %v783
    %v820 = vunpack.c.l.b16 %v784
    %v821 = vunpack.c.l.b16 %v785
    %v822 = vunpack.c.l.b16 %v786
    %v823 = vunpack.c.l.b16 %v787
    %v824 = vunpack.c.l.b16 %v788
    %v825 = vunpack.c.l.b16 %v789
    %v826 = vunpack.c.l.b16 %v790
    %v827 = vunpack.c.l.b16 %v791
    %v828 = vunpack.c.l.b16 %v792
    %v829 = vunpack.c.l.b16 %v793
    %v830 = vunpack.c.l.b16 %v794
    %v831 = vunpack.c.l.b16 %v795
    %v832 = vpack.c.b16 %v817, %v816
    %v833 = vpack.c.b16 %v819, %v818
    %v834 = vpack.c.b16 %v821, %v820
    %v835 = vpack.c.b16 %v823, %v822
    %v836 = vpack.c.b16 %v825, %v824
    %v837 = vpack.c.b16 %v827, %v826
    %v838 = vpack.c.b16 %v829, %v828
    %v839 = vpack.c.b16 %v831, %v830
    %848 = vmatpush.bf16.msra.mxu0 %v839
    %849 = vmatpush.bf16.msra.mxu0 %v838
    %850 = vmatpush.bf16.msra.mxu0 %v837
    %851 = vmatpush.bf16.msra.mxu0 %v836
    %852 = vmatpush.bf16.msra.mxu0 %v835
    %853 = vmatpush.bf16.msra.mxu0 %v834
    %854 = vmatpush.bf16.msra.mxu0 %v833
    %855 = vmatpush.bf16.msra.mxu0 %v832
    %856 = vmatmul.bf16.gmra.mxu0 %v779
    %v857 = vpop.f32.mrf.mxu0
    %v858 = vadd.f32 %v798, %v857
    %v859 = vpop.f32.mrf.mxu0
    %v860 = vadd.f32 %v798, %v859
    %861 = vdwg.mxu0
    %v862 = vmax.f32 %v858, 0.0
    %v863 = vmax.f32 %v860, 0.0
    %v864 = vpack.c.bf16 %v863, %v862
    %v865 = vld [vmem:[#allocation8] sm:$0xf]
    %v866 = vld [vmem:[#allocation8 + $0x4] sm:$0xf]
    %v867 = vld [vmem:[#allocation8 + $0x8] sm:$0xf]
    %v868 = vld [vmem:[#allocation8 + $0xc] sm:$0xf]
    %v869 = vld [vmem:[#allocation8 + $0x10] sm:$0xf]
    %v870 = vld [vmem:[#allocation8 + $0x14] sm:$0xf]
    %v871 = vld [vmem:[#allocation8 + $0x18] sm:$0xf]
    %v872 = vld [vmem:[#allocation8 + $0x1c] sm:$0xf]
    %v873 = vld [vmem:[#allocation8 + $0x20] sm:$0xf]
    %v874 = vld [vmem:[#allocation8 + $0x24] sm:$0xf]
    %v875 = vld [vmem:[#allocation8 + $0x28] sm:$0xf]
    %v876 = vld [vmem:[#allocation8 + $0x2c] sm:$0xf]
    %v877 = vld [vmem:[#allocation8 + $0x30] sm:$0xf]
    %v878 = vld [vmem:[#allocation8 + $0x34] sm:$0xf]
    %v879 = vld [vmem:[#allocation8 + $0x38] sm:$0xf]
    %v880 = vld [vmem:[#allocation8 + $0x3c] sm:$0xf]
    %v881 = vld [vmem:[%s6] sm:$0x1]
    %v883 = vperm.slane %v881, 0
    %v901 = vunpack.c.l.b16 %v865
    %v902 = vunpack.c.l.b16 %v866
    %v903 = vunpack.c.l.b16 %v867
    %v904 = vunpack.c.l.b16 %v868
    %v905 = vunpack.c.l.b16 %v869
    %v906 = vunpack.c.l.b16 %v870
    %v907 = vunpack.c.l.b16 %v871
    %v908 = vunpack.c.l.b16 %v872
    %v909 = vunpack.c.l.b16 %v873
    %v910 = vunpack.c.l.b16 %v874
    %v911 = vunpack.c.l.b16 %v875
    %v912 = vunpack.c.l.b16 %v876
    %v913 = vunpack.c.l.b16 %v877
    %v914 = vunpack.c.l.b16 %v878
    %v915 = vunpack.c.l.b16 %v879
    %v916 = vunpack.c.l.b16 %v880
    %v917 = vpack.c.b16 %v902, %v901
    %v918 = vpack.c.b16 %v904, %v903
    %v919 = vpack.c.b16 %v906, %v905
    %v920 = vpack.c.b16 %v908, %v907
    %v921 = vpack.c.b16 %v910, %v909
    %v922 = vpack.c.b16 %v912, %v911
    %v923 = vpack.c.b16 %v914, %v913
    %v924 = vpack.c.b16 %v916, %v915
    %933 = vmatpush.bf16.msra.mxu0 %v924
    %934 = vmatpush.bf16.msra.mxu0 %v923
    %935 = vmatpush.bf16.msra.mxu0 %v922
    %936 = vmatpush.bf16.msra.mxu0 %v921
    %937 = vmatpush.bf16.msra.mxu0 %v920
    %938 = vmatpush.bf16.msra.mxu0 %v919
    %939 = vmatpush.bf16.msra.mxu0 %v918
    %940 = vmatpush.bf16.msra.mxu0 %v917
    %941 = vmatmul.bf16.gmra.mxu0 %v864
    %v942 = vpop.f32.mrf.mxu0
    %v943 = vadd.f32 %v883, %v942
    %v944 = vpop.f32.mrf.mxu0
    %v945 = vadd.f32 %v883, %v944
    %946 = vdwg.mxu0
    %v947 = vmax.f32 %v943, 0.0
    %v948 = vmax.f32 %v945, 0.0
    %v949 = vpack.c.bf16 %v948, %v947
    %v950 = vld [vmem:[#allocation10] sm:$0xff]
    %v951 = vld [vmem:[#allocation10 + $0x8] sm:$0xff]
    %v952 = vld [vmem:[#allocation10 + $0x10] sm:$0xff]
    %v953 = vld [vmem:[#allocation10 + $0x18] sm:$0xff]
    %v954 = vld [vmem:[#allocation10 + $0x20] sm:$0xff]
    %v955 = vld [vmem:[#allocation10 + $0x28] sm:$0xff]
    %v956 = vld [vmem:[#allocation10 + $0x30] sm:$0xff]
    %v957 = vld [vmem:[#allocation10 + $0x38] sm:$0xff]
    %v958 = vld [vmem:[#allocation10 + $0x40] sm:$0xff]
    %v959 = vld [vmem:[#allocation10 + $0x48] sm:$0xff]
    %v960 = vld [vmem:[#allocation10 + $0x50] sm:$0xff]
    %v961 = vld [vmem:[#allocation10 + $0x58] sm:$0xff]
    %v962 = vld [vmem:[#allocation10 + $0x60] sm:$0xff]
    %v963 = vld [vmem:[#allocation10 + $0x68] sm:$0xff]
    %v964 = vld [vmem:[#allocation10 + $0x70] sm:$0xff]
    %v965 = vld [vmem:[#allocation10 + $0x78] sm:$0xff]
    %v966 = vld [vmem:[#allocation10 + $0x80] sm:$0xff]
    %v967 = vld [vmem:[#allocation10 + $0x88] sm:$0xff]
    %v968 = vld [vmem:[#allocation10 + $0x90] sm:$0xff]
    %v969 = vld [vmem:[#allocation10 + $0x98] sm:$0xff]
    %v970 = vld [vmem:[#allocation10 + $0xa0] sm:$0xff]
    %v971 = vld [vmem:[#allocation10 + $0xa8] sm:$0xff]
    %v972 = vld [vmem:[#allocation10 + $0xb0] sm:$0xff]
    %v973 = vld [vmem:[#allocation10 + $0xb8] sm:$0xff]
    %v974 = vld [vmem:[#allocation10 + $0xc0] sm:$0xff]
    %v975 = vld [vmem:[#allocation10 + $0xc8] sm:$0xff]
    %v976 = vld [vmem:[#allocation10 + $0xd0] sm:$0xff]
    %v977 = vld [vmem:[#allocation10 + $0xd8] sm:$0xff]
    %v978 = vld [vmem:[#allocation10 + $0xe0] sm:$0xff]
    %v979 = vld [vmem:[#allocation10 + $0xe8] sm:$0xff]
    %v980 = vld [vmem:[#allocation10 + $0xf0] sm:$0xff]
    %v981 = vld [vmem:[#allocation10 + $0xf8] sm:$0xff]
    %v982 = vld [vmem:[#allocation10 + $0x100] sm:$0xff]
    %v983 = vld [vmem:[#allocation10 + $0x108] sm:$0xff]
    %v984 = vld [vmem:[#allocation10 + $0x110] sm:$0xff]
    %v985 = vld [vmem:[#allocation10 + $0x118] sm:$0xff]
    %v986 = vld [vmem:[#allocation10 + $0x120] sm:$0xff]
    %v987 = vld [vmem:[#allocation10 + $0x128] sm:$0xff]
    %v988 = vld [vmem:[#allocation10 + $0x130] sm:$0xff]
    %v989 = vld [vmem:[#allocation10 + $0x138] sm:$0xff]
    %v990 = vld [vmem:[#allocation10 + $0x140] sm:$0xff]
    %v991 = vld [vmem:[#allocation10 + $0x148] sm:$0xff]
    %v992 = vld [vmem:[#allocation10 + $0x150] sm:$0xff]
    %v993 = vld [vmem:[#allocation10 + $0x158] sm:$0xff]
    %v994 = vld [vmem:[#allocation10 + $0x160] sm:$0xff]
    %v995 = vld [vmem:[#allocation10 + $0x168] sm:$0xff]
    %v996 = vld [vmem:[#allocation10 + $0x170] sm:$0xff]
    %v997 = vld [vmem:[#allocation10 + $0x178] sm:$0xff]
    %v998 = vld [vmem:[#allocation10 + $0x180] sm:$0xff]
    %v999 = vld [vmem:[#allocation10 + $0x188] sm:$0xff]
    %v1000 = vld [vmem:[#allocation10 + $0x190] sm:$0xff]
    %v1001 = vld [vmem:[#allocation10 + $0x198] sm:$0xff]
    %v1002 = vld [vmem:[#allocation10 + $0x1a0] sm:$0xff]
    %v1003 = vld [vmem:[#allocation10 + $0x1a8] sm:$0xff]
    %v1004 = vld [vmem:[#allocation10 + $0x1b0] sm:$0xff]
    %v1005 = vld [vmem:[#allocation10 + $0x1b8] sm:$0xff]
    %v1006 = vld [vmem:[#allocation10 + $0x1c0] sm:$0xff]
    %v1007 = vld [vmem:[#allocation10 + $0x1c8] sm:$0xff]
    %v1008 = vld [vmem:[#allocation10 + $0x1d0] sm:$0xff]
    %v1009 = vld [vmem:[#allocation10 + $0x1d8] sm:$0xff]
    %v1010 = vld [vmem:[#allocation10 + $0x1e0] sm:$0xff]
    %v1011 = vld [vmem:[#allocation10 + $0x1e8] sm:$0xff]
    %v1012 = vld [vmem:[#allocation10 + $0x1f0] sm:$0xff]
    %v1013 = vld [vmem:[#allocation10 + $0x1f8] sm:$0xff]
    %v1014 = vld [vmem:[#allocation11] sm:$0xff]
    %v1016 = vperm.slane %v1014, 0
    %v1017 = vperm.slane %v1014, 1
    %v1018 = vperm.slane %v1014, 2
    %v1019 = vperm.slane %v1014, 3
    %v1020 = vperm.slane %v1014, 4
    %v1021 = vperm.slane %v1014, 5
    %v1022 = vperm.slane %v1014, 6
    %v1023 = vperm.slane %v1014, 7
    %v1096 = vunpack.c.l.b16 %v950
    %v1097 = vunpack.c.h.b16 %v950
    %v1098 = vunpack.c.l.b16 %v951
    %v1099 = vunpack.c.h.b16 %v951
    %v1100 = vunpack.c.l.b16 %v952
    %v1101 = vunpack.c.h.b16 %v952
    %v1102 = vunpack.c.l.b16 %v953
    %v1103 = vunpack.c.h.b16 %v953
    %v1104 = vunpack.c.l.b16 %v954
    %v1105 = vunpack.c.h.b16 %v954
    %v1106 = vunpack.c.l.b16 %v955
    %v1107 = vunpack.c.h.b16 %v955
    %v1108 = vunpack.c.l.b16 %v956
    %v1109 = vunpack.c.h.b16 %v956
    %v1110 = vunpack.c.l.b16 %v957
    %v1111 = vunpack.c.h.b16 %v957
    %v1112 = vunpack.c.l.b16 %v958
    %v1113 = vunpack.c.h.b16 %v958
    %v1114 = vunpack.c.l.b16 %v959
    %v1115 = vunpack.c.h.b16 %v959
    %v1116 = vunpack.c.l.b16 %v960
    %v1117 = vunpack.c.h.b16 %v960
    %v1118 = vunpack.c.l.b16 %v961
    %v1119 = vunpack.c.h.b16 %v961
    %v1120 = vunpack.c.l.b16 %v962
    %v1121 = vunpack.c.h.b16 %v962
    %v1122 = vunpack.c.l.b16 %v963
    %v1123 = vunpack.c.h.b16 %v963
    %v1124 = vunpack.c.l.b16 %v964
    %v1125 = vunpack.c.h.b16 %v964
    %v1126 = vunpack.c.l.b16 %v965
    %v1127 = vunpack.c.h.b16 %v965
    %v1128 = vunpack.c.l.b16 %v966
    %v1129 = vunpack.c.h.b16 %v966
    %v1130 = vunpack.c.l.b16 %v967
    %v1131 = vunpack.c.h.b16 %v967
    %v1132 = vunpack.c.l.b16 %v968
    %v1133 = vunpack.c.h.b16 %v968
    %v1134 = vunpack.c.l.b16 %v969
    %v1135 = vunpack.c.h.b16 %v969
    %v1136 = vunpack.c.l.b16 %v970
    %v1137 = vunpack.c.h.b16 %v970
    %v1138 = vunpack.c.l.b16 %v971
    %v1139 = vunpack.c.h.b16 %v971
    %v1140 = vunpack.c.l.b16 %v972
    %v1141 = vunpack.c.h.b16 %v972
    %v1142 = vunpack.c.l.b16 %v973
    %v1143 = vunpack.c.h.b16 %v973
    %v1144 = vunpack.c.l.b16 %v974
    %v1145 = vunpack.c.h.b16 %v974
    %v1146 = vunpack.c.l.b16 %v975
    %v1147 = vunpack.c.h.b16 %v975
    %v1148 = vunpack.c.l.b16 %v976
    %v1149 = vunpack.c.h.b16 %v976
    %v1150 = vunpack.c.l.b16 %v977
    %v1151 = vunpack.c.h.b16 %v977
    %v1152 = vunpack.c.l.b16 %v978
    %v1153 = vunpack.c.h.b16 %v978
    %v1154 = vunpack.c.l.b16 %v979
    %v1155 = vunpack.c.h.b16 %v979
    %v1156 = vunpack.c.l.b16 %v980
    %v1157 = vunpack.c.h.b16 %v980
    %v1158 = vunpack.c.l.b16 %v981
    %v1159 = vunpack.c.h.b16 %v981
    %v1160 = vunpack.c.l.b16 %v982
    %v1161 = vunpack.c.h.b16 %v982
    %v1162 = vunpack.c.l.b16 %v983
    %v1163 = vunpack.c.h.b16 %v983
    %v1164 = vunpack.c.l.b16 %v984
    %v1165 = vunpack.c.h.b16 %v984
    %v1166 = vunpack.c.l.b16 %v985
    %v1167 = vunpack.c.h.b16 %v985
    %v1168 = vunpack.c.l.b16 %v986
    %v1169 = vunpack.c.h.b16 %v986
    %v1170 = vunpack.c.l.b16 %v987
    %v1171 = vunpack.c.h.b16 %v987
    %v1172 = vunpack.c.l.b16 %v988
    %v1173 = vunpack.c.h.b16 %v988
    %v1174 = vunpack.c.l.b16 %v989
    %v1175 = vunpack.c.h.b16 %v989
    %v1176 = vunpack.c.l.b16 %v990
    %v1177 = vunpack.c.h.b16 %v990
    %v1178 = vunpack.c.l.b16 %v991
    %v1179 = vunpack.c.h.b16 %v991
    %v1180 = vunpack.c.l.b16 %v992
    %v1181 = vunpack.c.h.b16 %v992
    %v1182 = vunpack.c.l.b16 %v993
    %v1183 = vunpack.c.h.b16 %v993
    %v1184 = vunpack.c.l.b16 %v994
    %v1185 = vunpack.c.h.b16 %v994
    %v1186 = vunpack.c.l.b16 %v995
    %v1187 = vunpack.c.h.b16 %v995
    %v1188 = vunpack.c.l.b16 %v996
    %v1189 = vunpack.c.h.b16 %v996
    %v1190 = vunpack.c.l.b16 %v997
    %v1191 = vunpack.c.h.b16 %v997
    %v1192 = vunpack.c.l.b16 %v998
    %v1193 = vunpack.c.h.b16 %v998
    %v1194 = vunpack.c.l.b16 %v999
    %v1195 = vunpack.c.h.b16 %v999
    %v1196 = vunpack.c.l.b16 %v1000
    %v1197 = vunpack.c.h.b16 %v1000
    %v1198 = vunpack.c.l.b16 %v1001
    %v1199 = vunpack.c.h.b16 %v1001
    %v1200 = vunpack.c.l.b16 %v1002
    %v1201 = vunpack.c.h.b16 %v1002
    %v1202 = vunpack.c.l.b16 %v1003
    %v1203 = vunpack.c.h.b16 %v1003
    %v1204 = vunpack.c.l.b16 %v1004
    %v1205 = vunpack.c.h.b16 %v1004
    %v1206 = vunpack.c.l.b16 %v1005
    %v1207 = vunpack.c.h.b16 %v1005
    %v1208 = vunpack.c.l.b16 %v1006
    %v1209 = vunpack.c.h.b16 %v1006
    %v1210 = vunpack.c.l.b16 %v1007
    %v1211 = vunpack.c.h.b16 %v1007
    %v1212 = vunpack.c.l.b16 %v1008
    %v1213 = vunpack.c.h.b16 %v1008
    %v1214 = vunpack.c.l.b16 %v1009
    %v1215 = vunpack.c.h.b16 %v1009
    %v1216 = vunpack.c.l.b16 %v1010
    %v1217 = vunpack.c.h.b16 %v1010
    %v1218 = vunpack.c.l.b16 %v1011
    %v1219 = vunpack.c.h.b16 %v1011
    %v1220 = vunpack.c.l.b16 %v1012
    %v1221 = vunpack.c.h.b16 %v1012
    %v1222 = vunpack.c.l.b16 %v1013
    %v1223 = vunpack.c.h.b16 %v1013
    %v1224 = vpack.c.b16 %v1104, %v1096
    %v1225 = vpack.c.b16 %v1105, %v1097
    %v1226 = vpack.c.b16 %v1106, %v1098
    %v1227 = vpack.c.b16 %v1107, %v1099
    %v1228 = vpack.c.b16 %v1108, %v1100
    %v1229 = vpack.c.b16 %v1109, %v1101
    %v1230 = vpack.c.b16 %v1110, %v1102
    %v1231 = vpack.c.b16 %v1111, %v1103
    %v1232 = vpack.c.b16 %v1120, %v1112
    %v1233 = vpack.c.b16 %v1121, %v1113
    %v1234 = vpack.c.b16 %v1122, %v1114
    %v1235 = vpack.c.b16 %v1123, %v1115
    %v1236 = vpack.c.b16 %v1124, %v1116
    %v1237 = vpack.c.b16 %v1125, %v1117
    %v1238 = vpack.c.b16 %v1126, %v1118
    %v1239 = vpack.c.b16 %v1127, %v1119
    %v1240 = vpack.c.b16 %v1136, %v1128
    %v1241 = vpack.c.b16 %v1137, %v1129
    %v1242 = vpack.c.b16 %v1138, %v1130
    %v1243 = vpack.c.b16 %v1139, %v1131
    %v1244 = vpack.c.b16 %v1140, %v1132
    %v1245 = vpack.c.b16 %v1141, %v1133
    %v1246 = vpack.c.b16 %v1142, %v1134
    %v1247 = vpack.c.b16 %v1143, %v1135
    %v1248 = vpack.c.b16 %v1152, %v1144
    %v1249 = vpack.c.b16 %v1153, %v1145
    %v1250 = vpack.c.b16 %v1154, %v1146
    %v1251 = vpack.c.b16 %v1155, %v1147
    %v1252 = vpack.c.b16 %v1156, %v1148
    %v1253 = vpack.c.b16 %v1157, %v1149
    %v1254 = vpack.c.b16 %v1158, %v1150
    %v1255 = vpack.c.b16 %v1159, %v1151
    %v1256 = vpack.c.b16 %v1168, %v1160
    %v1257 = vpack.c.b16 %v1169, %v1161
    %v1258 = vpack.c.b16 %v1170, %v1162
    %v1259 = vpack.c.b16 %v1171, %v1163
    %v1260 = vpack.c.b16 %v1172, %v1164
    %v1261 = vpack.c.b16 %v1173, %v1165
    %v1262 = vpack.c.b16 %v1174, %v1166
    %v1263 = vpack.c.b16 %v1175, %v1167
    %v1264 = vpack.c.b16 %v1184, %v1176
    %v1265 = vpack.c.b16 %v1185, %v1177
    %v1266 = vpack.c.b16 %v1186, %v1178
    %v1267 = vpack.c.b16 %v1187, %v1179
    %v1268 = vpack.c.b16 %v1188, %v1180
    %v1269 = vpack.c.b16 %v1189, %v1181
    %v1270 = vpack.c.b16 %v1190, %v1182
    %v1271 = vpack.c.b16 %v1191, %v1183
    %v1272 = vpack.c.b16 %v1200, %v1192
    %v1273 = vpack.c.b16 %v1201, %v1193
    %v1274 = vpack.c.b16 %v1202, %v1194
    %v1275 = vpack.c.b16 %v1203, %v1195
    %v1276 = vpack.c.b16 %v1204, %v1196
    %v1277 = vpack.c.b16 %v1205, %v1197
    %v1278 = vpack.c.b16 %v1206, %v1198
    %v1279 = vpack.c.b16 %v1207, %v1199
    %v1280 = vpack.c.b16 %v1216, %v1208
    %v1281 = vpack.c.b16 %v1217, %v1209
    %v1282 = vpack.c.b16 %v1218, %v1210
    %v1283 = vpack.c.b16 %v1219, %v1211
    %v1284 = vpack.c.b16 %v1220, %v1212
    %v1285 = vpack.c.b16 %v1221, %v1213
    %v1286 = vpack.c.b16 %v1222, %v1214
    %v1287 = vpack.c.b16 %v1223, %v1215
    %1352 = vmatpush.bf16.msra.mxu0 %v1280
    %1353 = vmatpush.bf16.msra.mxu0 %v1272
    %1354 = vmatpush.bf16.msra.mxu0 %v1264
    %1355 = vmatpush.bf16.msra.mxu0 %v1256
    %1356 = vmatpush.bf16.msra.mxu0 %v1248
    %1357 = vmatpush.bf16.msra.mxu0 %v1240
    %1358 = vmatpush.bf16.msra.mxu0 %v1232
    %1359 = vmatpush.bf16.msra.mxu0 %v1224
    %1360 = vmatmul.bf16.gmra.mxu0 %v949
    %v1361 = vpop.f32.mrf.mxu0
    %v1362 = vadd.f32 %v1016, %v1361
    %v1363 = vpop.f32.mrf.mxu0
    %v1364 = vadd.f32 %v1016, %v1363
    %1365 = vdwg.mxu0
    %1366 = vmatpush.bf16.msra.mxu0 %v1281
    %1367 = vmatpush.bf16.msra.mxu0 %v1273
    %1368 = vmatpush.bf16.msra.mxu0 %v1265
    %1369 = vmatpush.bf16.msra.mxu0 %v1257
    %1370 = vmatpush.bf16.msra.mxu0 %v1249
    %1371 = vmatpush.bf16.msra.mxu0 %v1241
    %1372 = vmatpush.bf16.msra.mxu0 %v1233
    %1373 = vmatpush.bf16.msra.mxu0 %v1225
    %1374 = vmatmul.bf16.gmra.mxu0 %v949
    %v1375 = vpop.f32.mrf.mxu0
    %v1376 = vadd.f32 %v1017, %v1375
    %v1377 = vpop.f32.mrf.mxu0
    %v1378 = vadd.f32 %v1017, %v1377
    %1379 = vdwg.mxu0
    %1380 = vmatpush.bf16.msra.mxu0 %v1282
    %1381 = vmatpush.bf16.msra.mxu0 %v1274
    %1382 = vmatpush.bf16.msra.mxu0 %v1266
    %1383 = vmatpush.bf16.msra.mxu0 %v1258
    %1384 = vmatpush.bf16.msra.mxu0 %v1250
    %1385 = vmatpush.bf16.msra.mxu0 %v1242
    %1386 = vmatpush.bf16.msra.mxu0 %v1234
    %1387 = vmatpush.bf16.msra.mxu0 %v1226
    %1388 = vmatmul.bf16.gmra.mxu0 %v949
    %v1389 = vpop.f32.mrf.mxu0
    %v1390 = vadd.f32 %v1018, %v1389
    %v1391 = vpop.f32.mrf.mxu0
    %v1392 = vadd.f32 %v1018, %v1391
    %1393 = vdwg.mxu0
    %1394 = vmatpush.bf16.msra.mxu0 %v1283
    %1395 = vmatpush.bf16.msra.mxu0 %v1275
    %1396 = vmatpush.bf16.msra.mxu0 %v1267
    %1397 = vmatpush.bf16.msra.mxu0 %v1259
    %1398 = vmatpush.bf16.msra.mxu0 %v1251
    %1399 = vmatpush.bf16.msra.mxu0 %v1243
    %1400 = vmatpush.bf16.msra.mxu0 %v1235
    %1401 = vmatpush.bf16.msra.mxu0 %v1227
    %1402 = vmatmul.bf16.gmra.mxu0 %v949
    %v1403 = vpop.f32.mrf.mxu0
    %v1404 = vadd.f32 %v1019, %v1403
    %v1405 = vpop.f32.mrf.mxu0
    %v1406 = vadd.f32 %v1019, %v1405
    %1407 = vdwg.mxu0
    %1408 = vmatpush.bf16.msra.mxu0 %v1284
    %1409 = vmatpush.bf16.msra.mxu0 %v1276
    %1410 = vmatpush.bf16.msra.mxu0 %v1268
    %1411 = vmatpush.bf16.msra.mxu0 %v1260
    %1412 = vmatpush.bf16.msra.mxu0 %v1252
    %1413 = vmatpush.bf16.msra.mxu0 %v1244
    %1414 = vmatpush.bf16.msra.mxu0 %v1236
    %1415 = vmatpush.bf16.msra.mxu0 %v1228
    %1416 = vmatmul.bf16.gmra.mxu0 %v949
    %v1417 = vpop.f32.mrf.mxu0
    %v1418 = vadd.f32 %v1020, %v1417
    %v1419 = vpop.f32.mrf.mxu0
    %v1420 = vadd.f32 %v1020, %v1419
    %1421 = vdwg.mxu0
    %1422 = vmatpush.bf16.msra.mxu0 %v1285
    %1423 = vmatpush.bf16.msra.mxu0 %v1277
    %1424 = vmatpush.bf16.msra.mxu0 %v1269
    %1425 = vmatpush.bf16.msra.mxu0 %v1261
    %1426 = vmatpush.bf16.msra.mxu0 %v1253
    %1427 = vmatpush.bf16.msra.mxu0 %v1245
    %1428 = vmatpush.bf16.msra.mxu0 %v1237
    %1429 = vmatpush.bf16.msra.mxu0 %v1229
    %1430 = vmatmul.bf16.gmra.mxu0 %v949
    %v1431 = vpop.f32.mrf.mxu0
    %v1432 = vadd.f32 %v1021, %v1431
    %v1433 = vpop.f32.mrf.mxu0
    %v1434 = vadd.f32 %v1021, %v1433
    %1435 = vdwg.mxu0
    %1436 = vmatpush.bf16.msra.mxu0 %v1286
    %1437 = vmatpush.bf16.msra.mxu0 %v1278
    %1438 = vmatpush.bf16.msra.mxu0 %v1270
    %1439 = vmatpush.bf16.msra.mxu0 %v1262
    %1440 = vmatpush.bf16.msra.mxu0 %v1254
    %1441 = vmatpush.bf16.msra.mxu0 %v1246
    %1442 = vmatpush.bf16.msra.mxu0 %v1238
    %1443 = vmatpush.bf16.msra.mxu0 %v1230
    %1444 = vmatmul.bf16.gmra.mxu0 %v949
    %v1445 = vpop.f32.mrf.mxu0
    %v1446 = vadd.f32 %v1022, %v1445
    %v1447 = vpop.f32.mrf.mxu0
    %v1448 = vadd.f32 %v1022, %v1447
    %1449 = vdwg.mxu0
    %1450 = vmatpush.bf16.msra.mxu0 %v1287
    %1451 = vmatpush.bf16.msra.mxu0 %v1279
    %1452 = vmatpush.bf16.msra.mxu0 %v1271
    %1453 = vmatpush.bf16.msra.mxu0 %v1263
    %1454 = vmatpush.bf16.msra.mxu0 %v1255
    %1455 = vmatpush.bf16.msra.mxu0 %v1247
    %1456 = vmatpush.bf16.msra.mxu0 %v1239
    %1457 = vmatpush.bf16.msra.mxu0 %v1231
    %1458 = vmatmul.bf16.gmra.mxu0 %v949
    %v1459 = vpop.f32.mrf.mxu0
    %v1460 = vadd.f32 %v1023, %v1459
    %v1461 = vpop.f32.mrf.mxu0
    %v1462 = vadd.f32 %v1023, %v1461
    %1463 = vdwg.mxu0
    %v1464 = vmul.f32 %v1362, 0.5
    %v1465 = vmul.f32 %v1376, 0.5
    %v1466 = vmul.f32 %v1390, 0.5
    %v1467 = vmul.f32 %v1404, 0.5
    %v1468 = vmul.f32 %v1418, 0.5
    %v1469 = vmul.f32 %v1432, 0.5
    %v1470 = vmul.f32 %v1446, 0.5
    %v1471 = vmul.f32 %v1460, 0.5
    %v1472 = vmul.f32 %v1364, 0.5
    %v1473 = vmul.f32 %v1378, 0.5
    %v1474 = vmul.f32 %v1392, 0.5
    %v1475 = vmul.f32 %v1406, 0.5
    %v1476 = vmul.f32 %v1420, 0.5
    %v1477 = vmul.f32 %v1434, 0.5
    %v1478 = vmul.f32 %v1448, 0.5
    %v1479 = vmul.f32 %v1462, 0.5
    %v1480 = vtanh.pop %v1464
    %v1481 = vtanh.pop %v1465
    %v1482 = vtanh.pop %v1466
    %v1483 = vtanh.pop %v1467
    %v1484 = vtanh.pop %v1468
    %v1485 = vtanh.pop %v1469
    %v1486 = vtanh.pop %v1470
    %v1487 = vtanh.pop %v1471
    %v1488 = vtanh.pop %v1472
    %v1489 = vtanh.pop %v1473
    %v1490 = vtanh.pop %v1474
    %v1491 = vtanh.pop %v1475
    %v1492 = vtanh.pop %v1476
    %v1493 = vtanh.pop %v1477
    %v1494 = vtanh.pop %v1478
    %v1495 = vtanh.pop %v1479
    %v1496 = vmul.f32 %v1480, 0.5
    %v1497 = vmul.f32 %v1481, 0.5
    %v1498 = vmul.f32 %v1482, 0.5
    %v1499 = vmul.f32 %v1483, 0.5
    %v1500 = vmul.f32 %v1484, 0.5
    %v1501 = vmul.f32 %v1485, 0.5
    %v1502 = vmul.f32 %v1486, 0.5
    %v1503 = vmul.f32 %v1487, 0.5
    %v1504 = vmul.f32 %v1488, 0.5
    %v1505 = vmul.f32 %v1489, 0.5
    %v1506 = vmul.f32 %v1490, 0.5
    %v1507 = vmul.f32 %v1491, 0.5
    %v1508 = vmul.f32 %v1492, 0.5
    %v1509 = vmul.f32 %v1493, 0.5
    %v1510 = vmul.f32 %v1494, 0.5
    %v1511 = vmul.f32 %v1495, 0.5
    %v1512 = vadd.f32 %v1496, 0.5
    %v1513 = vadd.f32 %v1497, 0.5
    %v1514 = vadd.f32 %v1498, 0.5
    %v1515 = vadd.f32 %v1499, 0.5
    %v1516 = vadd.f32 %v1500, 0.5
    %v1517 = vadd.f32 %v1501, 0.5
    %v1518 = vadd.f32 %v1502, 0.5
    %v1519 = vadd.f32 %v1503, 0.5
    %v1520 = vadd.f32 %v1504, 0.5
    %v1521 = vadd.f32 %v1505, 0.5
    %v1522 = vadd.f32 %v1506, 0.5
    %v1523 = vadd.f32 %v1507, 0.5
    %v1524 = vadd.f32 %v1508, 0.5
    %v1525 = vadd.f32 %v1509, 0.5
    %v1526 = vadd.f32 %v1510, 0.5
    %v1527 = vadd.f32 %v1511, 0.5
    %1528 = vst [vmem:[#allocation13] sm:$0xff] %v1512
    %1529 = vst [vmem:[#allocation13 + $0x8] sm:$0xff] %v1513
    %1530 = vst [vmem:[#allocation13 + $0x10] sm:$0xff] %v1514
    %1531 = vst [vmem:[#allocation13 + $0x18] sm:$0xff] %v1515
    %1532 = vst [vmem:[#allocation13 + $0x20] sm:$0xff] %v1516
    %1533 = vst [vmem:[#allocation13 + $0x28] sm:$0xff] %v1517
    %1534 = vst [vmem:[#allocation13 + $0x30] sm:$0xff] %v1518
    %1535 = vst [vmem:[#allocation13 + $0x38] sm:$0xff] %v1519
    %1536 = vst [vmem:[#allocation13 + $0x40] sm:$0xff] %v1520
    %1537 = vst [vmem:[#allocation13 + $0x48] sm:$0xff] %v1521
    %1538 = vst [vmem:[#allocation13 + $0x50] sm:$0xff] %v1522
    %1539 = vst [vmem:[#allocation13 + $0x58] sm:$0xff] %v1523
    %1540 = vst [vmem:[#allocation13 + $0x60] sm:$0xff] %v1524
    %1541 = vst [vmem:[#allocation13 + $0x68] sm:$0xff] %v1525
    %1542 = vst [vmem:[#allocation13 + $0x70] sm:$0xff] %v1526
    %1543 = vst [vmem:[#allocation13 + $0x78] sm:$0xff] %v1527
    // Predicated region
    $region62: #{tpu_custom_call.1} parent=1 // pred_check
      _
    $region63: #{tpu_custom_call.1} parent=1 // pred_check_branch
      %1545 = sbr.rel (0) target = $region65
    $region64: #{tpu_custom_call.1} parent=1 // pred_region
      %1547 = vsyncadd [#allocation4], 0
      %s1548 = sshll.u32 [#allocation13], 4
      %s1549 = int_to_ptr.vmem [resolvable:$true] %s1548
      %s1550 = sshll.u32 %s9, 4
      %s1551 = int_to_ptr.hbm [resolvable:$true] %s1550
      %1556 = dma.vmem_to_hbm [thread:$0]  %s1549, 2048, %s1551, [#allocation4], 1024, 1024, 64
    $region65: #{tpu_custom_call.1} parent=1 // pred_fallthru
      _
    // Predicated region
    $region66: #{tpu_custom_call.1} parent=1 // pred_check
      _
    $region67: #{tpu_custom_call.1} parent=1 // pred_check_branch
      %1558 = sbr.rel (0) target = $region69
    $region68: #{tpu_custom_call.1} parent=1 // pred_region
      %1560 = dma.done [#allocation4], 2048
    $region69: #{tpu_custom_call.1} parent=1 // pred_fallthru
      _
    %1561 = vsyncpa [#allocation3], 1
    %1562 = vsyncpa [#allocation6], 1
    %1563 = vsyncpa [#allocation9], 1
    %1564 = vsyncpa [#allocation12], 1
    %1565 = vsyncpa [#allocation4], 1

</llo_original>
